<compile_context>
chip_gen: v7x
topology: tpu7x:2x2x1
jax: 0.10.0
libtpu: 0.0.40
codegen_flags: <defaults>
</compile_context>

<pallas_src>
import functools
import math

import jax
import jax.numpy as jnp
import numpy as np
from jax import lax
from jax.experimental import pallas as pl
from jax.experimental.pallas import tpu as pltpu


def _mha_kernel(x_ref, wq_ref, wk_ref, wv_ref, wo_ref, bq_ref, bv_ref, bo_ref,
                o_ref, q_scr, k_scr, v_scr, ctx_ref, *, num_heads, head_dim_p,
                q_tile, kv_tile, num_kv_tiles, scale, compute_dtype):
    # x_ref:  (1, S, E_pad)   compute_dtype (whole padded sequence for this batch)
    # wq/wk/wv/wo_ref: (E_pad, E_pad) compute_dtype, pre-transposed (in, out)
    # bq/bv/bo_ref: (1, E_pad) f32
    # o_ref:  (1, tq, E_pad)
    # q_scr:  (tq, E_pad) compute_dtype VMEM scratch (projected, scaled Q)
    # k_scr/v_scr: (tk, E_pad) compute_dtype VMEM scratch (projected K/V, current tile)
    # ctx_ref: (tq, E_pad) f32 VMEM scratch (per-head contexts, packed)
    H, Dp, tq, tk = num_heads, head_dim_p, q_tile, kv_tile
    f32 = jnp.float32

    q_start = pl.multiple_of(pl.program_id(1) * tq, tq)
    xq = x_ref[0, pl.ds(q_start, tq), :]                       # (tq, E_pad) bf16

    # Q projection for this query tile: one big lane-dense matmul, f32 accumulate.
    # The 1/sqrt(D) scale (true D, not padded) is folded into q here, once.
    q_scr[...] = ((jnp.dot(xq, wq_ref[...], preferred_element_type=f32)
                   + bq_ref[...]) * scale).astype(compute_dtype)

    def kv_step(kj, carry):
        ms, ls, accs = carry                                   # tuples of length H
        k_start = pl.multiple_of(kj * tk, tk)
        xk = x_ref[0, pl.ds(k_start, tk), :]                   # (tk, E_pad) bf16
        # K/V projections for ALL heads at once: two wide, lane-dense matmuls per
        # KV tile (output width E_pad, a multiple of 128) shared by every head.
        # K bias intentionally omitted: q . b_k is constant over kv positions,
        # so softmax is unchanged (exact shift invariance).
        k_scr[...] = jnp.dot(xk, wk_ref[...],
                             preferred_element_type=f32).astype(compute_dtype)
        v_scr[...] = jnp.dot(xk, wv_ref[...],
                             preferred_element_type=f32).astype(compute_dtype)

        new_m, new_l, new_acc = [], [], []
        for h in range(H):                                     # static unroll; no transposes
            hs = h * Dp
            q_h = q_scr[:, hs:hs + Dp]                         # (tq, Dp) cheap ref view
            k_h = k_scr[:, hs:hs + Dp]                         # (tk, Dp)
            v_h = v_scr[:, hs:hs + Dp]                         # (tk, Dp)
            s = jnp.einsum('qd,kd->qk', q_h, k_h,
                           preferred_element_type=f32)         # (tq, tk) f32
            m_p, l_p, acc_p = ms[h], ls[h], accs[h]
            m_n = jnp.maximum(m_p, jnp.max(s, axis=-1, keepdims=True))
            alpha = jnp.exp(m_p - m_n)
            p = jnp.exp(s - m_n)
            l_n = alpha * l_p + jnp.sum(p, axis=-1, keepdims=True)
            acc_n = alpha * acc_p + jnp.dot(p.astype(compute_dtype), v_h,
                                            preferred_element_type=f32)
            new_m.append(m_n)
            new_l.append(l_n)
            new_acc.append(acc_n)
        return tuple(new_m), tuple(new_l), tuple(new_acc)

    m0 = tuple(jnp.full((tq, 1), -1e30, f32) for _ in range(H))
    l0 = tuple(jnp.zeros((tq, 1), f32) for _ in range(H))
    a0 = tuple(jnp.zeros((tq, Dp), f32) for _ in range(H))
    _, l_f, acc_f = lax.fori_loop(0, num_kv_tiles, kv_step, (m0, l0, a0),
                                  unroll=num_kv_tiles <= 8)

    for h in range(H):
        hs = h * Dp
        # V bias hoisted out of the loop: attn @ (V + b_v) == attn @ V + b_v,
        # since each softmax row sums to 1.
        ctx_ref[:, hs:hs + Dp] = (acc_f[h] * pl.reciprocal(l_f[h], approx=True)
                                  + bv_ref[:, hs:hs + Dp])     # write head's columns

    # Output projection: single lane-dense (tq, E_pad) x (E_pad, E_pad) matmul.
    out = (jnp.dot(ctx_ref[...].astype(compute_dtype), wo_ref[...],
                   preferred_element_type=f32) + bo_ref[...])
    o_ref[0] = out.astype(o_ref.dtype)


def multi_head_attention(x, wqkv, bqkv, wout, bout, *, num_heads,
                         compute_dtype=jnp.bfloat16):
    """x: (B, S, E); wqkv: (3E, E); bqkv: (3E,); wout: (E, E); bout: (E,)."""
    B, S, E = x.shape
    H = num_heads
    assert E % H == 0
    D = E // H
    assert D % 8 == 0 and D <= 128, "Only head_dim <= 128 and divisible by 8"

    # --- lane-density padding: pad head_dim so E_pad = H * D_pad is a multiple of 128.
    step = 128 // math.gcd(128, H)
    D_pad = ((D + step - 1) // step) * step
    E_pad = H * D_pad

    # --- tile sizes (full-S tiles at small S; bounded tiles at large S).
    tq = S if S <= 256 else 256
    tk = S if S <= 512 else 512
    assert S % tq == 0 and S % tk == 0, "sequence length must divide the tile sizes"
    # TODO(synk): ragged / non-divisible sequence lengths would need masked tail tiles.
    num_q_tiles = S // tq
    num_kv_tiles = S // tk
    scale = 1.0 / math.sqrt(D)

    # --- parameter prep (plain JAX glue): per-head zero-padding + pre-transpose so
    # the kernel computes y = x @ W_T + b directly. Padded columns of Q/K/V and of
    # the output are exactly zero, so results are unchanged and sliced off at the end.
    w3 = jnp.pad(wqkv.reshape(3, H, D, E),
                 ((0, 0), (0, 0), (0, D_pad - D), (0, E_pad - E)))
    wq_t = w3[0].reshape(E_pad, E_pad).T.astype(compute_dtype)   # (in, out)
    wk_t = w3[1].reshape(E_pad, E_pad).T.astype(compute_dtype)
    wv_t = w3[2].reshape(E_pad, E_pad).T.astype(compute_dtype)
    b3 = jnp.pad(bqkv.reshape(3, H, D), ((0, 0), (0, 0), (0, D_pad - D)))
    bq = b3[0].reshape(1, E_pad).astype(jnp.float32)
    bv = b3[2].reshape(1, E_pad).astype(jnp.float32)
    # b3[1] (K bias) is not passed: softmax(q.(k + b_k)) == softmax(q.k).
    wo = jnp.pad(wout.reshape(E, H, D),
                 ((0, E_pad - E), (0, 0), (0, D_pad - D)))
    wo_t = wo.reshape(E_pad, E_pad).T.astype(compute_dtype)      # (in=(h,d), out)
    bo = jnp.pad(bout, (0, E_pad - E)).reshape(1, E_pad).astype(jnp.float32)
    x_p = jnp.pad(x, ((0, 0), (0, 0), (0, E_pad - E))).astype(compute_dtype)

    # --- explicit VMEM budget (x + out double-buffered, weights single-buffered,
    # biases + q/k/v/ctx scratch), with headroom; floor at the 32 MiB scoped
    # default and capped below v7x's 64 MiB physical VMEM.
    c_it = jnp.dtype(compute_dtype).itemsize
    o_it = jnp.dtype(x.dtype).itemsize
    vmem_bytes = (2 * S * E_pad * c_it              # x block (double-buffered)
                  + 2 * tq * E_pad * o_it           # out block (double-buffered)
                  + 4 * E_pad * E_pad * c_it        # weights, single resident copy
                  + 3 * E_pad * 4                   # biases
                  + tq * E_pad * 4                  # ctx scratch (f32)
                  + (tq + 2 * tk) * E_pad * c_it)   # q/k/v projection scratch
    vmem_limit = int(min(max(3 * vmem_bytes, 32 * 1024 * 1024), 56 * 1024 * 1024))

    kernel = functools.partial(
        _mha_kernel, num_heads=H, head_dim_p=D_pad, q_tile=tq, kv_tile=tk,
        num_kv_tiles=num_kv_tiles, scale=scale, compute_dtype=compute_dtype)

    # Grid-invariant weights/biases: whole array resident in VMEM, no double buffer.
    wspec = pl.BlockSpec(memory_space=pltpu.MemorySpace.VMEM)

    out_p = pl.pallas_call(
        kernel,
        out_shape=jax.ShapeDtypeStruct((B, S, E_pad), x.dtype),
        grid_spec=pltpu.PrefetchScalarGridSpec(
            num_scalar_prefetch=0,
            grid=(B, num_q_tiles),
            in_specs=[
                pl.BlockSpec((1, S, E_pad), lambda b, qi: (b, 0, 0)),  # x (per batch)
                wspec, wspec, wspec, wspec,   # wq_t, wk_t, wv_t, wo_t
                wspec, wspec, wspec,          # bq, bv, bo
            ],
            out_specs=pl.BlockSpec((1, tq, E_pad), lambda b, qi: (b, qi, 0)),
            scratch_shapes=[
                pltpu.VMEM((tq, E_pad), compute_dtype),   # q_scr
                pltpu.VMEM((tk, E_pad), compute_dtype),   # k_scr
                pltpu.VMEM((tk, E_pad), compute_dtype),   # v_scr
                pltpu.VMEM((tq, E_pad), jnp.float32),     # ctx
            ],
        ),
        compiler_params=pltpu.CompilerParams(
            dimension_semantics=("parallel", "parallel"),
            vmem_limit_bytes=vmem_limit),
    )(x_p, wq_t, wk_t, wv_t, wo_t, bq, bv, bo)

    return out_p[..., :E]


def _reference(x, wqkv, bqkv, wout, bout, num_heads):
    B, S, E = x.shape
    D = E // num_heads
    qkv = jnp.einsum('bse,fe->bsf', x, wqkv) + bqkv           # (B, S, 3E)
    qkv = qkv.reshape(B, S, 3, num_heads, D)
    q = qkv[:, :, 0].transpose(0, 2, 1, 3)                    # (B, H, S, D)
    k = qkv[:, :, 1].transpose(0, 2, 1, 3)
    v = qkv[:, :, 2].transpose(0, 2, 1, 3)
    scores = jnp.einsum('bhqd,bhkd->bhqk', q, k) / math.sqrt(D)
    attn = jax.nn.softmax(scores, axis=-1)
    ctx = jnp.einsum('bhqk,bhkd->bhqd', attn, v)
    ctx = ctx.transpose(0, 2, 1, 3).reshape(B, S, E)
    return jnp.einsum('bse,fe->bsf', ctx, wout) + bout


if __name__ == "__main__":
    # Small shapes consistent with the module's constraints:
    # head_dim = embed_dim / num_heads = 32 / 4 = 8 (divisible by 8, <= 128).
    B, S, E, H = 2, 8, 32, 4

    key = jax.random.PRNGKey(0)
    k1, k2, k3, k4, k5 = jax.random.split(key, 5)

    # nn.Linear-style init: uniform(-1/sqrt(fan_in), 1/sqrt(fan_in)).
    bound = 1.0 / math.sqrt(E)
    wqkv = jax.random.uniform(k1, (3 * E, E), jnp.float32, -bound, bound)
    bqkv = jax.random.uniform(k2, (3 * E,), jnp.float32, -bound, bound)
    wout = jax.random.uniform(k3, (E, E), jnp.float32, -bound, bound)
    bout = jax.random.uniform(k4, (E,), jnp.float32, -bound, bound)

    x = jax.random.normal(k5, (B, S, E), jnp.float32)

    out = multi_head_attention(x, wqkv, bqkv, wout, bout, num_heads=H)
    out = jax.block_until_ready(out)

    ref = jax.block_until_ready(_reference(x, wqkv, bqkv, wout, bout, H))
    # bf16 MXU operands + approx reciprocal -> compare against the f32 reference
    # with a tolerance comfortably above the expected ~1e-2 worst-case error.
    np.testing.assert_allclose(np.asarray(out), np.asarray(ref),
                               rtol=3e-2, atol=3e-2)

    print("KERNEL_OK")
</pallas_src>

<mosaic_0001>
module attributes {stable_mosaic.version = 11 : i64} {
  func.func @_mha_kernel(%arg0: i32, %arg1: i32, %arg2: memref<1x8x128xbf16, #tpu.memory_space<vmem>>, %arg3: memref<128x128xbf16, #tpu.memory_space<vmem>>, %arg4: memref<128x128xbf16, #tpu.memory_space<vmem>>, %arg5: memref<128x128xbf16, #tpu.memory_space<vmem>>, %arg6: memref<128x128xbf16, #tpu.memory_space<vmem>>, %arg7: memref<1x128xf32, #tpu.memory_space<vmem>>, %arg8: memref<1x128xf32, #tpu.memory_space<vmem>>, %arg9: memref<1x128xf32, #tpu.memory_space<vmem>>, %arg10: memref<1x8x128xf32, #tpu.memory_space<vmem>>, %arg11: memref<8x128xbf16, #tpu.memory_space<vmem>>, %arg12: memref<8x128xbf16, #tpu.memory_space<vmem>>, %arg13: memref<8x128xbf16, #tpu.memory_space<vmem>>, %arg14: memref<8x128xf32, #tpu.memory_space<vmem>>) attributes {dimension_semantics = [#tpu.dimension_semantics<parallel>, #tpu.dimension_semantics<parallel>], iteration_bounds = array<i64: 2, 1>, scalar_prefetch = 0 : i64, scratch_operands = 4 : i64, tpu.core_type = #tpu.core_type<tc>, window_params = [{transform_indices = @transform_0, window_bounds = array<i64: 1, 8, 128>}, {pipeline_mode = #tpu.pipeline_mode<synchronous>, transform_indices = @transform_1, window_bounds = array<i64: 128, 128>}, {pipeline_mode = #tpu.pipeline_mode<synchronous>, transform_indices = @transform_2, window_bounds = array<i64: 128, 128>}, {pipeline_mode = #tpu.pipeline_mode<synchronous>, transform_indices = @transform_3, window_bounds = array<i64: 128, 128>}, {pipeline_mode = #tpu.pipeline_mode<synchronous>, transform_indices = @transform_4, window_bounds = array<i64: 128, 128>}, {pipeline_mode = #tpu.pipeline_mode<synchronous>, transform_indices = @transform_5, window_bounds = array<i64: 1, 128>}, {pipeline_mode = #tpu.pipeline_mode<synchronous>, transform_indices = @transform_6, window_bounds = array<i64: 1, 128>}, {pipeline_mode = #tpu.pipeline_mode<synchronous>, transform_indices = @transform_7, window_bounds = array<i64: 1, 128>}, {transform_indices = @transform_8, window_bounds = array<i64: 1, 8, 128>}]} {
    %c8_i32 = arith.constant 8 : i32
    %0 = arith.muli %arg1, %c8_i32 : i32
    %1 = tpu.assume_multiple %0, 8 : i32
    %c0 = arith.constant 0 : index
    %2 = arith.index_cast %1 : i32 to index
    %c0_0 = arith.constant 0 : index
    %3 = vector.load %arg2[%c0, %2, %c0_0] : memref<1x8x128xbf16, #tpu.memory_space<vmem>>, vector<1x8x128xbf16>
    %4 = vector.shape_cast %3 : vector<1x8x128xbf16> to vector<8x128xbf16>
    %c0_1 = arith.constant 0 : index
    %c0_2 = arith.constant 0 : index
    %5 = vector.load %arg3[%c0_1, %c0_2] : memref<128x128xbf16, #tpu.memory_space<vmem>>, vector<128x128xbf16>
    %cst = arith.constant dense<0.000000e+00> : vector<8x128xf32>
    %6 = tpu.matmul %4, %5, %cst {dimension_numbers = #tpu.dot_dimension_numbers<[1], [0], [0], [1], [0, 0, 1, 1], [], []>} : vector<8x128xbf16>, vector<128x128xbf16>, vector<8x128xf32> -> vector<8x128xf32>
    %c0_3 = arith.constant 0 : index
    %c0_4 = arith.constant 0 : index
    %7 = vector.load %arg7[%c0_3, %c0_4] : memref<1x128xf32, #tpu.memory_space<vmem>>, vector<1x128xf32>
    %8 = vector.broadcast %7 : vector<1x128xf32> to vector<8x128xf32>
    %9 = arith.addf %6, %8 : vector<8x128xf32>
    %cst_5 = arith.constant 0.353553385 : f32
    %10 = vector.broadcast %cst_5 : f32 to vector<8x128xf32>
    %11 = arith.mulf %9, %10 : vector<8x128xf32>
    %12 = arith.truncf %11 : vector<8x128xf32> to vector<8x128xbf16>
    %c0_6 = arith.constant 0 : index
    %c0_7 = arith.constant 0 : index
    %13 = vector.load %arg11[%c0_6, %c0_7] : memref<8x128xbf16, #tpu.memory_space<vmem>>, vector<8x128xbf16>
    tpu.vector_store %arg11[%c0_6, %c0_7], %12 {strides = array<i32>} : memref<8x128xbf16, #tpu.memory_space<vmem>>, vector<8x128xbf16>,
    %cst_8 = arith.constant -1.000000e+30 : f32
    %14 = vector.broadcast %cst_8 : f32 to vector<8x1xf32>
    %cst_9 = arith.constant -1.000000e+30 : f32
    %15 = vector.broadcast %cst_9 : f32 to vector<8x1xf32>
    %cst_10 = arith.constant -1.000000e+30 : f32
    %16 = vector.broadcast %cst_10 : f32 to vector<8x1xf32>
    %cst_11 = arith.constant -1.000000e+30 : f32
    %17 = vector.broadcast %cst_11 : f32 to vector<8x1xf32>
    %cst_12 = arith.constant 0.000000e+00 : f32
    %18 = vector.broadcast %cst_12 : f32 to vector<8x1xf32>
    %cst_13 = arith.constant 0.000000e+00 : f32
    %19 = vector.broadcast %cst_13 : f32 to vector<8x1xf32>
    %cst_14 = arith.constant 0.000000e+00 : f32
    %20 = vector.broadcast %cst_14 : f32 to vector<8x1xf32>
    %cst_15 = arith.constant 0.000000e+00 : f32
    %21 = vector.broadcast %cst_15 : f32 to vector<8x1xf32>
    %cst_16 = arith.constant 0.000000e+00 : f32
    %22 = vector.broadcast %cst_16 : f32 to vector<8x32xf32>
    %cst_17 = arith.constant 0.000000e+00 : f32
    %23 = vector.broadcast %cst_17 : f32 to vector<8x32xf32>
    %cst_18 = arith.constant 0.000000e+00 : f32
    %24 = vector.broadcast %cst_18 : f32 to vector<8x32xf32>
    %cst_19 = arith.constant 0.000000e+00 : f32
    %25 = vector.broadcast %cst_19 : f32 to vector<8x32xf32>
    %c0_i32 = arith.constant 0 : i32
    %c8_i32_20 = arith.constant 8 : i32
    %26 = arith.muli %c0_i32, %c8_i32_20 : i32
    %27 = tpu.assume_multiple %26, 8 : i32
    %c0_21 = arith.constant 0 : index
    %28 = arith.index_cast %27 : i32 to index
    %c0_22 = arith.constant 0 : index
    %29 = vector.load %arg2[%c0_21, %28, %c0_22] : memref<1x8x128xbf16, #tpu.memory_space<vmem>>, vector<1x8x128xbf16>
    %30 = vector.shape_cast %29 : vector<1x8x128xbf16> to vector<8x128xbf16>
    %c0_23 = arith.constant 0 : index
    %c0_24 = arith.constant 0 : index
    %31 = vector.load %arg4[%c0_23, %c0_24] : memref<128x128xbf16, #tpu.memory_space<vmem>>, vector<128x128xbf16>
    %cst_25 = arith.constant dense<0.000000e+00> : vector<8x128xf32>
    %32 = tpu.matmul %30, %31, %cst_25 {dimension_numbers = #tpu.dot_dimension_numbers<[1], [0], [0], [1], [0, 0, 1, 1], [], []>} : vector<8x128xbf16>, vector<128x128xbf16>, vector<8x128xf32> -> vector<8x128xf32>
    %33 = arith.truncf %32 : vector<8x128xf32> to vector<8x128xbf16>
    %c0_26 = arith.constant 0 : index
    %c0_27 = arith.constant 0 : index
    %34 = vector.load %arg12[%c0_26, %c0_27] : memref<8x128xbf16, #tpu.memory_space<vmem>>, vector<8x128xbf16>
    tpu.vector_store %arg12[%c0_26, %c0_27], %33 {strides = array<i32>} : memref<8x128xbf16, #tpu.memory_space<vmem>>, vector<8x128xbf16>,
    %c0_28 = arith.constant 0 : index
    %c0_29 = arith.constant 0 : index
    %35 = vector.load %arg5[%c0_28, %c0_29] : memref<128x128xbf16, #tpu.memory_space<vmem>>, vector<128x128xbf16>
    %cst_30 = arith.constant dense<0.000000e+00> : vector<8x128xf32>
    %36 = tpu.matmul %30, %35, %cst_30 {dimension_numbers = #tpu.dot_dimension_numbers<[1], [0], [0], [1], [0, 0, 1, 1], [], []>} : vector<8x128xbf16>, vector<128x128xbf16>, vector<8x128xf32> -> vector<8x128xf32>
    %37 = arith.truncf %36 : vector<8x128xf32> to vector<8x128xbf16>
    %c0_31 = arith.constant 0 : index
    %c0_32 = arith.constant 0 : index
    %38 = vector.load %arg13[%c0_31, %c0_32] : memref<8x128xbf16, #tpu.memory_space<vmem>>, vector<8x128xbf16>
    tpu.vector_store %arg13[%c0_31, %c0_32], %37 {strides = array<i32>} : memref<8x128xbf16, #tpu.memory_space<vmem>>, vector<8x128xbf16>,
    %c0_33 = arith.constant 0 : index
    %c0_34 = arith.constant 0 : index
    %39 = vector.load %arg11[%c0_33, %c0_34] : memref<8x128xbf16, #tpu.memory_space<vmem>>, vector<8x32xbf16>
    %c0_35 = arith.constant 0 : index
    %c0_36 = arith.constant 0 : index
    %40 = vector.load %arg12[%c0_35, %c0_36] : memref<8x128xbf16, #tpu.memory_space<vmem>>, vector<8x32xbf16>
    %c0_37 = arith.constant 0 : index
    %c0_38 = arith.constant 0 : index
    %41 = vector.load %arg13[%c0_37, %c0_38] : memref<8x128xbf16, #tpu.memory_space<vmem>>, vector<8x32xbf16>
    "tpu.trace_start"() <{level = 10 : i32, message = "qd,kd->qk"}> : () -> ()
    %cst_39 = arith.constant dense<0.000000e+00> : vector<8x8xf32>
    %42 = tpu.matmul %39, %40, %cst_39 {dimension_numbers = #tpu.dot_dimension_numbers<[1], [1], [0], [0], [0, 0, 1, 0], [], []>} : vector<8x32xbf16>, vector<8x32xbf16>, vector<8x8xf32> -> vector<8x8xf32>
    "tpu.trace_stop"() : () -> ()
    %cst_40 = arith.constant dense<0xFF800000> : vector<8xf32>
    %43 = vector.multi_reduction <maximumf>, %42, %cst_40 [1] : vector<8x8xf32> to vector<8xf32>
    %44 = vector.shape_cast %43 : vector<8xf32> to vector<8x1xf32>
    %45 = arith.maximumf %14, %44 : vector<8x1xf32>
    %46 = arith.subf %14, %45 : vector<8x1xf32>
    %47 = math.exp %46 : vector<8x1xf32>
    %48 = vector.broadcast %45 : vector<8x1xf32> to vector<8x8xf32>
    %49 = arith.subf %42, %48 : vector<8x8xf32>
    %50 = math.exp %49 : vector<8x8xf32>
    %51 = arith.mulf %47, %18 : vector<8x1xf32>
    %cst_41 = arith.constant dense<0.000000e+00> : vector<8xf32>
    %52 = vector.multi_reduction <add>, %50, %cst_41 [1] : vector<8x8xf32> to vector<8xf32>
    %53 = vector.shape_cast %52 : vector<8xf32> to vector<8x1xf32>
    %54 = arith.addf %51, %53 : vector<8x1xf32>
    %55 = vector.broadcast %47 : vector<8x1xf32> to vector<8x32xf32>
    %56 = arith.mulf %55, %22 : vector<8x32xf32>
    %57 = arith.truncf %50 : vector<8x8xf32> to vector<8x8xbf16>
    %cst_42 = arith.constant dense<0.000000e+00> : vector<8x32xf32>
    %58 = tpu.matmul %57, %41, %cst_42 {dimension_numbers = #tpu.dot_dimension_numbers<[1], [0], [0], [1], [0, 0, 1, 1], [], []>} : vector<8x8xbf16>, vector<8x32xbf16>, vector<8x32xf32> -> vector<8x32xf32>
    %59 = arith.addf %56, %58 : vector<8x32xf32>
    %c0_43 = arith.constant 0 : index
    %c32 = arith.constant 32 : index
    %60 = vector.load %arg11[%c0_43, %c32] : memref<8x128xbf16, #tpu.memory_space<vmem>>, vector<8x32xbf16>
    %c0_44 = arith.constant 0 : index
    %c32_45 = arith.constant 32 : index
    %61 = vector.load %arg12[%c0_44, %c32_45] : memref<8x128xbf16, #tpu.memory_space<vmem>>, vector<8x32xbf16>
    %c0_46 = arith.constant 0 : index
    %c32_47 = arith.constant 32 : index
    %62 = vector.load %arg13[%c0_46, %c32_47] : memref<8x128xbf16, #tpu.memory_space<vmem>>, vector<8x32xbf16>
    "tpu.trace_start"() <{level = 10 : i32, message = "qd,kd->qk"}> : () -> ()
    %cst_48 = arith.constant dense<0.000000e+00> : vector<8x8xf32>
    %63 = tpu.matmul %60, %61, %cst_48 {dimension_numbers = #tpu.dot_dimension_numbers<[1], [1], [0], [0], [0, 0, 1, 0], [], []>} : vector<8x32xbf16>, vector<8x32xbf16>, vector<8x8xf32> -> vector<8x8xf32>
    "tpu.trace_stop"() : () -> ()
    %cst_49 = arith.constant dense<0xFF800000> : vector<8xf32>
    %64 = vector.multi_reduction <maximumf>, %63, %cst_49 [1] : vector<8x8xf32> to vector<8xf32>
    %65 = vector.shape_cast %64 : vector<8xf32> to vector<8x1xf32>
    %66 = arith.maximumf %15, %65 : vector<8x1xf32>
    %67 = arith.subf %15, %66 : vector<8x1xf32>
    %68 = math.exp %67 : vector<8x1xf32>
    %69 = vector.broadcast %66 : vector<8x1xf32> to vector<8x8xf32>
    %70 = arith.subf %63, %69 : vector<8x8xf32>
    %71 = math.exp %70 : vector<8x8xf32>
    %72 = arith.mulf %68, %19 : vector<8x1xf32>
    %cst_50 = arith.constant dense<0.000000e+00> : vector<8xf32>
    %73 = vector.multi_reduction <add>, %71, %cst_50 [1] : vector<8x8xf32> to vector<8xf32>
    %74 = vector.shape_cast %73 : vector<8xf32> to vector<8x1xf32>
    %75 = arith.addf %72, %74 : vector<8x1xf32>
    %76 = vector.broadcast %68 : vector<8x1xf32> to vector<8x32xf32>
    %77 = arith.mulf %76, %23 : vector<8x32xf32>
    %78 = arith.truncf %71 : vector<8x8xf32> to vector<8x8xbf16>
    %cst_51 = arith.constant dense<0.000000e+00> : vector<8x32xf32>
    %79 = tpu.matmul %78, %62, %cst_51 {dimension_numbers = #tpu.dot_dimension_numbers<[1], [0], [0], [1], [0, 0, 1, 1], [], []>} : vector<8x8xbf16>, vector<8x32xbf16>, vector<8x32xf32> -> vector<8x32xf32>
    %80 = arith.addf %77, %79 : vector<8x32xf32>
    %c0_52 = arith.constant 0 : index
    %c64 = arith.constant 64 : index
    %81 = vector.load %arg11[%c0_52, %c64] : memref<8x128xbf16, #tpu.memory_space<vmem>>, vector<8x32xbf16>
    %c0_53 = arith.constant 0 : index
    %c64_54 = arith.constant 64 : index
    %82 = vector.load %arg12[%c0_53, %c64_54] : memref<8x128xbf16, #tpu.memory_space<vmem>>, vector<8x32xbf16>
    %c0_55 = arith.constant 0 : index
    %c64_56 = arith.constant 64 : index
    %83 = vector.load %arg13[%c0_55, %c64_56] : memref<8x128xbf16, #tpu.memory_space<vmem>>, vector<8x32xbf16>
    "tpu.trace_start"() <{level = 10 : i32, message = "qd,kd->qk"}> : () -> ()
    %cst_57 = arith.constant dense<0.000000e+00> : vector<8x8xf32>
    %84 = tpu.matmul %81, %82, %cst_57 {dimension_numbers = #tpu.dot_dimension_numbers<[1], [1], [0], [0], [0, 0, 1, 0], [], []>} : vector<8x32xbf16>, vector<8x32xbf16>, vector<8x8xf32> -> vector<8x8xf32>
    "tpu.trace_stop"() : () -> ()
    %cst_58 = arith.constant dense<0xFF800000> : vector<8xf32>
    %85 = vector.multi_reduction <maximumf>, %84, %cst_58 [1] : vector<8x8xf32> to vector<8xf32>
    %86 = vector.shape_cast %85 : vector<8xf32> to vector<8x1xf32>
    %87 = arith.maximumf %16, %86 : vector<8x1xf32>
    %88 = arith.subf %16, %87 : vector<8x1xf32>
    %89 = math.exp %88 : vector<8x1xf32>
    %90 = vector.broadcast %87 : vector<8x1xf32> to vector<8x8xf32>
    %91 = arith.subf %84, %90 : vector<8x8xf32>
    %92 = math.exp %91 : vector<8x8xf32>
    %93 = arith.mulf %89, %20 : vector<8x1xf32>
    %cst_59 = arith.constant dense<0.000000e+00> : vector<8xf32>
    %94 = vector.multi_reduction <add>, %92, %cst_59 [1] : vector<8x8xf32> to vector<8xf32>
    %95 = vector.shape_cast %94 : vector<8xf32> to vector<8x1xf32>
    %96 = arith.addf %93, %95 : vector<8x1xf32>
    %97 = vector.broadcast %89 : vector<8x1xf32> to vector<8x32xf32>
    %98 = arith.mulf %97, %24 : vector<8x32xf32>
    %99 = arith.truncf %92 : vector<8x8xf32> to vector<8x8xbf16>
    %cst_60 = arith.constant dense<0.000000e+00> : vector<8x32xf32>
    %100 = tpu.matmul %99, %83, %cst_60 {dimension_numbers = #tpu.dot_dimension_numbers<[1], [0], [0], [1], [0, 0, 1, 1], [], []>} : vector<8x8xbf16>, vector<8x32xbf16>, vector<8x32xf32> -> vector<8x32xf32>
    %101 = arith.addf %98, %100 : vector<8x32xf32>
    %c0_61 = arith.constant 0 : index
    %c96 = arith.constant 96 : index
    %102 = vector.load %arg11[%c0_61, %c96] : memref<8x128xbf16, #tpu.memory_space<vmem>>, vector<8x32xbf16>
    %c0_62 = arith.constant 0 : index
    %c96_63 = arith.constant 96 : index
    %103 = vector.load %arg12[%c0_62, %c96_63] : memref<8x128xbf16, #tpu.memory_space<vmem>>, vector<8x32xbf16>
    %c0_64 = arith.constant 0 : index
    %c96_65 = arith.constant 96 : index
    %104 = vector.load %arg13[%c0_64, %c96_65] : memref<8x128xbf16, #tpu.memory_space<vmem>>, vector<8x32xbf16>
    "tpu.trace_start"() <{level = 10 : i32, message = "qd,kd->qk"}> : () -> ()
    %cst_66 = arith.constant dense<0.000000e+00> : vector<8x8xf32>
    %105 = tpu.matmul %102, %103, %cst_66 {dimension_numbers = #tpu.dot_dimension_numbers<[1], [1], [0], [0], [0, 0, 1, 0], [], []>} : vector<8x32xbf16>, vector<8x32xbf16>, vector<8x8xf32> -> vector<8x8xf32>
    "tpu.trace_stop"() : () -> ()
    %cst_67 = arith.constant dense<0xFF800000> : vector<8xf32>
    %106 = vector.multi_reduction <maximumf>, %105, %cst_67 [1] : vector<8x8xf32> to vector<8xf32>
    %107 = vector.shape_cast %106 : vector<8xf32> to vector<8x1xf32>
    %108 = arith.maximumf %17, %107 : vector<8x1xf32>
    %109 = arith.subf %17, %108 : vector<8x1xf32>
    %110 = math.exp %109 : vector<8x1xf32>
    %111 = vector.broadcast %108 : vector<8x1xf32> to vector<8x8xf32>
    %112 = arith.subf %105, %111 : vector<8x8xf32>
    %113 = math.exp %112 : vector<8x8xf32>
    %114 = arith.mulf %110, %21 : vector<8x1xf32>
    %cst_68 = arith.constant dense<0.000000e+00> : vector<8xf32>
    %115 = vector.multi_reduction <add>, %113, %cst_68 [1] : vector<8x8xf32> to vector<8xf32>
    %116 = vector.shape_cast %115 : vector<8xf32> to vector<8x1xf32>
    %117 = arith.addf %114, %116 : vector<8x1xf32>
    %118 = vector.broadcast %110 : vector<8x1xf32> to vector<8x32xf32>
    %119 = arith.mulf %118, %25 : vector<8x32xf32>
    %120 = arith.truncf %113 : vector<8x8xf32> to vector<8x8xbf16>
    %cst_69 = arith.constant dense<0.000000e+00> : vector<8x32xf32>
    %121 = tpu.matmul %120, %104, %cst_69 {dimension_numbers = #tpu.dot_dimension_numbers<[1], [0], [0], [1], [0, 0, 1, 1], [], []>} : vector<8x8xbf16>, vector<8x32xbf16>, vector<8x32xf32> -> vector<8x32xf32>
    %122 = arith.addf %119, %121 : vector<8x32xf32>
    %c1_i32 = arith.constant 1 : i32
    %123 = tpu.reciprocal %54 {approx = true} : vector<8x1xf32> -> vector<8x1xf32>
    %124 = vector.broadcast %123 : vector<8x1xf32> to vector<8x32xf32>
    %125 = arith.mulf %59, %124 : vector<8x32xf32>
    %c0_70 = arith.constant 0 : index
    %c0_71 = arith.constant 0 : index
    %126 = vector.load %arg8[%c0_70, %c0_71] : memref<1x128xf32, #tpu.memory_space<vmem>>, vector<1x32xf32>
    %127 = vector.broadcast %126 : vector<1x32xf32> to vector<8x32xf32>
    %128 = arith.addf %125, %127 : vector<8x32xf32>
    %c0_72 = arith.constant 0 : index
    %c0_73 = arith.constant 0 : index
    %129 = vector.load %arg14[%c0_72, %c0_73] : memref<8x128xf32, #tpu.memory_space<vmem>>, vector<8x32xf32>
    tpu.vector_store %arg14[%c0_72, %c0_73], %128 {strides = array<i32>} : memref<8x128xf32, #tpu.memory_space<vmem>>, vector<8x32xf32>,
    %130 = tpu.reciprocal %75 {approx = true} : vector<8x1xf32> -> vector<8x1xf32>
    %131 = vector.broadcast %130 : vector<8x1xf32> to vector<8x32xf32>
    %132 = arith.mulf %80, %131 : vector<8x32xf32>
    %c0_74 = arith.constant 0 : index
    %c32_75 = arith.constant 32 : index
    %133 = vector.load %arg8[%c0_74, %c32_75] : memref<1x128xf32, #tpu.memory_space<vmem>>, vector<1x32xf32>
    %134 = vector.broadcast %133 : vector<1x32xf32> to vector<8x32xf32>
    %135 = arith.addf %132, %134 : vector<8x32xf32>
    %c0_76 = arith.constant 0 : index
    %c32_77 = arith.constant 32 : index
    %136 = vector.load %arg14[%c0_76, %c32_77] : memref<8x128xf32, #tpu.memory_space<vmem>>, vector<8x32xf32>
    tpu.vector_store %arg14[%c0_76, %c32_77], %135 {strides = array<i32>} : memref<8x128xf32, #tpu.memory_space<vmem>>, vector<8x32xf32>,
    %137 = tpu.reciprocal %96 {approx = true} : vector<8x1xf32> -> vector<8x1xf32>
    %138 = vector.broadcast %137 : vector<8x1xf32> to vector<8x32xf32>
    %139 = arith.mulf %101, %138 : vector<8x32xf32>
    %c0_78 = arith.constant 0 : index
    %c64_79 = arith.constant 64 : index
    %140 = vector.load %arg8[%c0_78, %c64_79] : memref<1x128xf32, #tpu.memory_space<vmem>>, vector<1x32xf32>
    %141 = vector.broadcast %140 : vector<1x32xf32> to vector<8x32xf32>
    %142 = arith.addf %139, %141 : vector<8x32xf32>
    %c0_80 = arith.constant 0 : index
    %c64_81 = arith.constant 64 : index
    %143 = vector.load %arg14[%c0_80, %c64_81] : memref<8x128xf32, #tpu.memory_space<vmem>>, vector<8x32xf32>
    tpu.vector_store %arg14[%c0_80, %c64_81], %142 {strides = array<i32>} : memref<8x128xf32, #tpu.memory_space<vmem>>, vector<8x32xf32>,
    %144 = tpu.reciprocal %117 {approx = true} : vector<8x1xf32> -> vector<8x1xf32>
    %145 = vector.broadcast %144 : vector<8x1xf32> to vector<8x32xf32>
    %146 = arith.mulf %122, %145 : vector<8x32xf32>
    %c0_82 = arith.constant 0 : index
    %c96_83 = arith.constant 96 : index
    %147 = vector.load %arg8[%c0_82, %c96_83] : memref<1x128xf32, #tpu.memory_space<vmem>>, vector<1x32xf32>
    %148 = vector.broadcast %147 : vector<1x32xf32> to vector<8x32xf32>
    %149 = arith.addf %146, %148 : vector<8x32xf32>
    %c0_84 = arith.constant 0 : index
    %c96_85 = arith.constant 96 : index
    %150 = vector.load %arg14[%c0_84, %c96_85] : memref<8x128xf32, #tpu.memory_space<vmem>>, vector<8x32xf32>
    tpu.vector_store %arg14[%c0_84, %c96_85], %149 {strides = array<i32>} : memref<8x128xf32, #tpu.memory_space<vmem>>, vector<8x32xf32>,
    %c0_86 = arith.constant 0 : index
    %c0_87 = arith.constant 0 : index
    %151 = vector.load %arg14[%c0_86, %c0_87] : memref<8x128xf32, #tpu.memory_space<vmem>>, vector<8x128xf32>
    %152 = arith.truncf %151 : vector<8x128xf32> to vector<8x128xbf16>
    %c0_88 = arith.constant 0 : index
    %c0_89 = arith.constant 0 : index
    %153 = vector.load %arg6[%c0_88, %c0_89] : memref<128x128xbf16, #tpu.memory_space<vmem>>, vector<128x128xbf16>
    %cst_90 = arith.constant dense<0.000000e+00> : vector<8x128xf32>
    %154 = tpu.matmul %152, %153, %cst_90 {dimension_numbers = #tpu.dot_dimension_numbers<[1], [0], [0], [1], [0, 0, 1, 1], [], []>} : vector<8x128xbf16>, vector<128x128xbf16>, vector<8x128xf32> -> vector<8x128xf32>
    %c0_91 = arith.constant 0 : index
    %c0_92 = arith.constant 0 : index
    %155 = vector.load %arg9[%c0_91, %c0_92] : memref<1x128xf32, #tpu.memory_space<vmem>>, vector<1x128xf32>
    %156 = vector.broadcast %155 : vector<1x128xf32> to vector<8x128xf32>
    %157 = arith.addf %154, %156 : vector<8x128xf32>
    %c0_93 = arith.constant 0 : index
    %c0_94 = arith.constant 0 : index
    %c0_95 = arith.constant 0 : index
    %158 = vector.load %arg10[%c0_93, %c0_94, %c0_95] : memref<1x8x128xf32, #tpu.memory_space<vmem>>, vector<1x8x128xf32>
    %159 = vector.shape_cast %158 : vector<1x8x128xf32> to vector<8x128xf32>
    %160 = vector.shape_cast %157 : vector<8x128xf32> to vector<1x8x128xf32>
    tpu.vector_store %arg10[%c0_93, %c0_94, %c0_95], %160 {strides = array<i32>} : memref<1x8x128xf32, #tpu.memory_space<vmem>>, vector<1x8x128xf32>,
    return
  }
  func.func @transform_0(%arg0: i32, %arg1: i32) -> (i32, i32, i32) {
    %c0_i32 = arith.constant 0 : i32
    %c0_i32_0 = arith.constant 0 : i32
    %c0_i32_1 = arith.constant 0 : i32
    return %arg0, %c0_i32, %c0_i32_0 : i32, i32, i32
  }
  func.func @transform_1(%arg0: i32, %arg1: i32) -> (i32, i32) {
    %c0_i32 = arith.constant 0 : i32
    %c0_i32_0 = arith.constant 0 : i32
    %c0_i32_1 = arith.constant 0 : i32
    return %c0_i32, %c0_i32_0 : i32, i32
  }
  func.func @transform_2(%arg0: i32, %arg1: i32) -> (i32, i32) {
    %c0_i32 = arith.constant 0 : i32
    %c0_i32_0 = arith.constant 0 : i32
    %c0_i32_1 = arith.constant 0 : i32
    return %c0_i32, %c0_i32_0 : i32, i32
  }
  func.func @transform_3(%arg0: i32, %arg1: i32) -> (i32, i32) {
    %c0_i32 = arith.constant 0 : i32
    %c0_i32_0 = arith.constant 0 : i32
    %c0_i32_1 = arith.constant 0 : i32
    return %c0_i32, %c0_i32_0 : i32, i32
  }
  func.func @transform_4(%arg0: i32, %arg1: i32) -> (i32, i32) {
    %c0_i32 = arith.constant 0 : i32
    %c0_i32_0 = arith.constant 0 : i32
    %c0_i32_1 = arith.constant 0 : i32
    return %c0_i32, %c0_i32_0 : i32, i32
  }
  func.func @transform_5(%arg0: i32, %arg1: i32) -> (i32, i32) {
    %c0_i32 = arith.constant 0 : i32
    %c0_i32_0 = arith.constant 0 : i32
    %c0_i32_1 = arith.constant 0 : i32
    return %c0_i32, %c0_i32_0 : i32, i32
  }
  func.func @transform_6(%arg0: i32, %arg1: i32) -> (i32, i32) {
    %c0_i32 = arith.constant 0 : i32
    %c0_i32_0 = arith.constant 0 : i32
    %c0_i32_1 = arith.constant 0 : i32
    return %c0_i32, %c0_i32_0 : i32, i32
  }
  func.func @transform_7(%arg0: i32, %arg1: i32) -> (i32, i32) {
    %c0_i32 = arith.constant 0 : i32
    %c0_i32_0 = arith.constant 0 : i32
    %c0_i32_1 = arith.constant 0 : i32
    return %c0_i32, %c0_i32_0 : i32, i32
  }
  func.func @transform_8(%arg0: i32, %arg1: i32) -> (i32, i32, i32) {
    %c0_i32 = arith.constant 0 : i32
    %c0_i32_0 = arith.constant 0 : i32
    return %arg0, %arg1, %c0_i32 : i32, i32, i32
  }
}

</mosaic_0001>

<llo_original>
// kernel: tpu_custom_call.1
$region0: #{tpu_custom_call.1}
  #allocation0 [shape = 'u32[]', space=smem, size = 0x4, offset = 0x4, fixed_abs, tag = 'smem constant byte address 0x4 - core index']
  #allocation1 [shape = 'u32[144,128]{1,0:T(1,128)}', space=vmem, size = 0x12000, scoped, tag = 'internal scratch']
  #allocation2 [shape = 'bf16[8,128]{1,0:T(8,128)(2,1)}', space=vmem, size = 0x800, scoped, tag = 'scratch operand']
  #allocation3 [shape = 'bf16[8,128]{1,0:T(8,128)(2,1)}', space=vmem, size = 0x800, scoped, tag = 'scratch operand']
  #allocation4 [shape = 'bf16[8,128]{1,0:T(8,128)(2,1)}', space=vmem, size = 0x800, scoped, tag = 'scratch operand']
  #allocation5 [shape = 'f32[8,128]{1,0:T(8,128)}', space=vmem, size = 0x1000, scoped, tag = 'scratch operand']
  %s0 = inlined_call_operand.hbm [shape: bf16[2,8,128], index: 0, kind: input, shape index: {}]
  %s1 = inlined_call_operand.hbm [shape: bf16[128,128], index: 1, kind: input, shape index: {}]
  %s2 = inlined_call_operand.hbm [shape: bf16[128,128], index: 2, kind: input, shape index: {}]
  %s3 = inlined_call_operand.hbm [shape: bf16[128,128], index: 3, kind: input, shape index: {}]
  %s4 = inlined_call_operand.hbm [shape: bf16[128,128], index: 4, kind: input, shape index: {}]
  %s5 = inlined_call_operand.vmem [shape: f32[1,128], index: 5, kind: input, shape index: {}]
  %s6 = inlined_call_operand.vmem [shape: f32[1,128], index: 6, kind: input, shape index: {}]
  %s7 = inlined_call_operand.vmem [shape: f32[1,128], index: 7, kind: input, shape index: {}]
  %s8 = inlined_call_operand.hbm [shape: f32[2,8,128], index: 8, kind: output, shape index: {}]
  %s9 = sld [smem:[#allocation0]]
  $region85: #{tpu_custom_call.1} parent=0
    _
  %s11 = ssub.s32 1, %s9
  %s12 = scalar_select 0, %s11, %s9
  $region1: #{tpu_custom_call.1} parent=0
    #allocation6 [shape = 'u8[4096]{0}', space=vmem, size = 0x1000, scoped, tag = 'input window, operand 0']
    #allocation7 [shape = 's32[2]{0}', space=sflag, size = 0x8, scoped, tag = 'scoped memory for tpu_custom_call.1']
    #allocation8 [shape = 's32[2]{0}', space=sflag, size = 0x8, scoped, tag = 'scoped memory for tpu_custom_call.1']
    #allocation9 [shape = 'u8[32768]{0}', space=vmem, size = 0x8000, scoped, tag = 'input window, operand 1, single buffered']
    #allocation10 [shape = 's32[1]{0}', space=sflag, size = 0x4, scoped, tag = 'scoped memory for tpu_custom_call.1']
    #allocation11 [shape = 'u8[32768]{0}', space=vmem, size = 0x8000, scoped, tag = 'input window, operand 2, single buffered']
    #allocation12 [shape = 'u8[32768]{0}', space=vmem, size = 0x8000, scoped, tag = 'input window, operand 3, single buffered']
    #allocation13 [shape = 's32[1]{0}', space=sflag, size = 0x4, scoped, tag = 'scoped memory for tpu_custom_call.1']
    #allocation14 [shape = 'u8[32768]{0}', space=vmem, size = 0x8000, scoped, tag = 'input window, operand 4, single buffered']
    #allocation15 [shape = 'u8[8192]{0}', space=vmem, size = 0x2000, scoped, tag = 'output window, operand 0']
    %13 = vsyncpa [#allocation7], 0
    %s14 = scalar_lea.sflag [#allocation7], 1
    %15 = vsyncpa %s14, 0
    %16 = vsyncpa [#allocation10], 0
    %17 = vsyncpa [#allocation13], 0
    %18 = vsyncpa [#allocation8], 0
    %s19 = scalar_lea.sflag [#allocation8], 1
    %20 = vsyncpa %s19, 0
    loop: start=0, step=1, limit=4
    $region2: #{tpu_custom_call.1} parent=1 // loop_pre_header
      _
    $region3: #{tpu_custom_call.1} parent=1 // loop_header
      %s22 = sphi 0, %s26
      %p23 = scmp.ge.s32.totalorder %s22, 4
      %s29 = sphi 0, %s41
      %s30 = sphi 0, %s37
      %s31 = sphi 0, %s29
      %s32 = sphi 0, %s30
      %s33 = sphi 0, %s31
      %s34 = sphi 0, %s32
      %s44 = sphi 0, %s46
      %s47 = sphi 0, %s44
      %s48 = sphi 0, %s47
      %s64 = sphi 0, %s48
      %s68 = sphi 0, %s68
      %s70 = sphi 0, %s68
      %s71 = sphi 0, %s70
      %s85 = sphi 0, %s71
      %s89 = sphi 0, %s89
      %s91 = sphi 0, %s89
      %s92 = sphi 0, %s91
      %s106 = sphi 0, %s92
      %s110 = sphi 0, %s110
      %s112 = sphi 0, %s110
      %s113 = sphi 0, %s112
      %s127 = sphi 0, %s113
      %s131 = sphi 0, %s131
      %s133 = sphi 0, %s131
      %s134 = sphi 0, %s133
      %s148 = sphi 0, %s134
      %s152 = sphi 0, %s152
      %s154 = sphi 0, %s152
      %s155 = sphi 0, %s154
      %s169 = sphi 0, %s155
      %s173 = sphi 0, %s173
      %s175 = sphi 0, %s173
      %s176 = sphi 0, %s175
      %s190 = sphi 0, %s176
      %s194 = sphi 0, %s194
      %s196 = sphi 0, %s194
      %s197 = sphi 0, %s196
      %s211 = sphi 0, %s197
      %s219 = sphi 0, %s221
      %s222 = sphi 0, %s219
      %s223 = sphi 0, %s222
      %s239 = sphi 0, %s223
    $region4: #{tpu_custom_call.1} parent=1 // loop_header_branch
      %25 = sbr.rel (%p23) target = $region8
    $region5: #{tpu_custom_call.1} parent=1 // loop_body
      %s27 = ssub.s32 %s22, 1
      %s28 = ssub.s32 %s22, 2
      %s35 = sadd.s32 1, %s30
      %p36 = scmp.ge.s32.totalorder %s35, 1
      %s37 = scalar_select %p36, 0, %s35
      %s38 = sadd.s32 1, %s29
      %s39 = scalar_select %p36, %s38, %s29
      %p40 = scmp.ge.s32.totalorder %s39, 2
      %s41 = scalar_select %p40, 0, %s39
      %s42 = ssub.s32 %s29, %s41
      %p43 = scmp.eq.s32.totalorder %s42, 0
      %s45 = sadd.s32 %s44, 1
      %s46 = scalar_select %p43, %s44, %s45
      %p49 = pneg %p43
      %p50 = scmp.eq.s32.totalorder %s22, 1
      %p51 = por %p49, %p50
      %p52 = scmp.ne.s32.totalorder %s44, %s47
      %p53 = scmp.eq.s32.totalorder %s22, 0
      %p54 = por %p52, %p53
      %p55 = scmp.ne.s32.totalorder %s44, %s47
      %p56 = scmp.eq.s32.totalorder %s27, 1
      %p57 = por %p55, %p56
      %p58 = scmp.ne.s32.totalorder %s47, %s48
      %p59 = scmp.eq.s32.totalorder %s27, 0
      %p60 = por %p58, %p59
      %p61 = scmp.ne.s32.totalorder %s47, %s48
      %p62 = scmp.eq.s32.totalorder %s28, 1
      %p63 = por %p61, %p62
      %p65 = scmp.ne.s32.totalorder %s48, %s64
      %p66 = scmp.eq.s32.totalorder %s28, 0
      %p67 = por %p65, %p66
      %s69 = sadd.s32 %s68, 1
      %p72 = scmp.eq.s32.totalorder %s22, 1
      %p73 = scmp.ne.s32.totalorder %s68, %s70
      %p74 = scmp.eq.s32.totalorder %s22, 0
      %p75 = por %p73, %p74
      %p76 = scmp.ne.s32.totalorder %s68, %s70
      %p77 = scmp.eq.s32.totalorder %s27, 1
      %p78 = por %p76, %p77
      %p79 = scmp.ne.s32.totalorder %s70, %s71
      %p80 = scmp.eq.s32.totalorder %s27, 0
      %p81 = por %p79, %p80
      %p82 = scmp.ne.s32.totalorder %s70, %s71
      %p83 = scmp.eq.s32.totalorder %s28, 1
      %p84 = por %p82, %p83
      %p86 = scmp.ne.s32.totalorder %s71, %s85
      %p87 = scmp.eq.s32.totalorder %s28, 0
      %p88 = por %p86, %p87
      %s90 = sadd.s32 %s89, 1
      %p93 = scmp.eq.s32.totalorder %s22, 1
      %p94 = scmp.ne.s32.totalorder %s89, %s91
      %p95 = scmp.eq.s32.totalorder %s22, 0
      %p96 = por %p94, %p95
      %p97 = scmp.ne.s32.totalorder %s89, %s91
      %p98 = scmp.eq.s32.totalorder %s27, 1
      %p99 = por %p97, %p98
      %p100 = scmp.ne.s32.totalorder %s91, %s92
      %p101 = scmp.eq.s32.totalorder %s27, 0
      %p102 = por %p100, %p101
      %p103 = scmp.ne.s32.totalorder %s91, %s92
      %p104 = scmp.eq.s32.totalorder %s28, 1
      %p105 = por %p103, %p104
      %p107 = scmp.ne.s32.totalorder %s92, %s106
      %p108 = scmp.eq.s32.totalorder %s28, 0
      %p109 = por %p107, %p108
      %s111 = sadd.s32 %s110, 1
      %p114 = scmp.eq.s32.totalorder %s22, 1
      %p115 = scmp.ne.s32.totalorder %s110, %s112
      %p116 = scmp.eq.s32.totalorder %s22, 0
      %p117 = por %p115, %p116
      %p118 = scmp.ne.s32.totalorder %s110, %s112
      %p119 = scmp.eq.s32.totalorder %s27, 1
      %p120 = por %p118, %p119
      %p121 = scmp.ne.s32.totalorder %s112, %s113
      %p122 = scmp.eq.s32.totalorder %s27, 0
      %p123 = por %p121, %p122
      %p124 = scmp.ne.s32.totalorder %s112, %s113
      %p125 = scmp.eq.s32.totalorder %s28, 1
      %p126 = por %p124, %p125
      %p128 = scmp.ne.s32.totalorder %s113, %s127
      %p129 = scmp.eq.s32.totalorder %s28, 0
      %p130 = por %p128, %p129
      %s132 = sadd.s32 %s131, 1
      %p135 = scmp.eq.s32.totalorder %s22, 1
      %p136 = scmp.ne.s32.totalorder %s131, %s133
      %p137 = scmp.eq.s32.totalorder %s22, 0
      %p138 = por %p136, %p137
      %p139 = scmp.ne.s32.totalorder %s131, %s133
      %p140 = scmp.eq.s32.totalorder %s27, 1
      %p141 = por %p139, %p140
      %p142 = scmp.ne.s32.totalorder %s133, %s134
      %p143 = scmp.eq.s32.totalorder %s27, 0
      %p144 = por %p142, %p143
      %p145 = scmp.ne.s32.totalorder %s133, %s134
      %p146 = scmp.eq.s32.totalorder %s28, 1
      %p147 = por %p145, %p146
      %p149 = scmp.ne.s32.totalorder %s134, %s148
      %p150 = scmp.eq.s32.totalorder %s28, 0
      %p151 = por %p149, %p150
      %s153 = sadd.s32 %s152, 1
      %p156 = scmp.eq.s32.totalorder %s22, 1
      %p157 = scmp.ne.s32.totalorder %s152, %s154
      %p158 = scmp.eq.s32.totalorder %s22, 0
      %p159 = por %p157, %p158
      %p160 = scmp.ne.s32.totalorder %s152, %s154
      %p161 = scmp.eq.s32.totalorder %s27, 1
      %p162 = por %p160, %p161
      %p163 = scmp.ne.s32.totalorder %s154, %s155
      %p164 = scmp.eq.s32.totalorder %s27, 0
      %p165 = por %p163, %p164
      %p166 = scmp.ne.s32.totalorder %s154, %s155
      %p167 = scmp.eq.s32.totalorder %s28, 1
      %p168 = por %p166, %p167
      %p170 = scmp.ne.s32.totalorder %s155, %s169
      %p171 = scmp.eq.s32.totalorder %s28, 0
      %p172 = por %p170, %p171
      %s174 = sadd.s32 %s173, 1
      %p177 = scmp.eq.s32.totalorder %s22, 1
      %p178 = scmp.ne.s32.totalorder %s173, %s175
      %p179 = scmp.eq.s32.totalorder %s22, 0
      %p180 = por %p178, %p179
      %p181 = scmp.ne.s32.totalorder %s173, %s175
      %p182 = scmp.eq.s32.totalorder %s27, 1
      %p183 = por %p181, %p182
      %p184 = scmp.ne.s32.totalorder %s175, %s176
      %p185 = scmp.eq.s32.totalorder %s27, 0
      %p186 = por %p184, %p185
      %p187 = scmp.ne.s32.totalorder %s175, %s176
      %p188 = scmp.eq.s32.totalorder %s28, 1
      %p189 = por %p187, %p188
      %p191 = scmp.ne.s32.totalorder %s176, %s190
      %p192 = scmp.eq.s32.totalorder %s28, 0
      %p193 = por %p191, %p192
      %s195 = sadd.s32 %s194, 1
      %p198 = scmp.eq.s32.totalorder %s22, 1
      %p199 = scmp.ne.s32.totalorder %s194, %s196
      %p200 = scmp.eq.s32.totalorder %s22, 0
      %p201 = por %p199, %p200
      %p202 = scmp.ne.s32.totalorder %s194, %s196
      %p203 = scmp.eq.s32.totalorder %s27, 1
      %p204 = por %p202, %p203
      %p205 = scmp.ne.s32.totalorder %s196, %s197
      %p206 = scmp.eq.s32.totalorder %s27, 0
      %p207 = por %p205, %p206
      %p208 = scmp.ne.s32.totalorder %s196, %s197
      %p209 = scmp.eq.s32.totalorder %s28, 1
      %p210 = por %p208, %p209
      %p212 = scmp.ne.s32.totalorder %s197, %s211
      %p213 = scmp.eq.s32.totalorder %s28, 0
      %p214 = por %p212, %p213
      %s215 = ssub.s32 %s29, %s41
      %s216 = ssub.s32 %s30, %s37
      %s217 = sor.u32 %s215, %s216
      %p218 = scmp.eq.s32.totalorder %s217, 0
      %s220 = sadd.s32 %s219, 1
      %s221 = scalar_select %p218, %s219, %s220
      %p224 = pneg %p218
      %p225 = scmp.eq.s32.totalorder %s22, 1
      %p226 = por %p224, %p225
      %p227 = scmp.ne.s32.totalorder %s219, %s222
      %p228 = scmp.eq.s32.totalorder %s22, 0
      %p229 = por %p227, %p228
      %p230 = scmp.ne.s32.totalorder %s219, %s222
      %p231 = scmp.eq.s32.totalorder %s27, 1
      %p232 = por %p230, %p231
      %p233 = scmp.ne.s32.totalorder %s222, %s223
      %p234 = scmp.eq.s32.totalorder %s27, 0
      %p235 = por %p233, %p234
      %p236 = scmp.ne.s32.totalorder %s222, %s223
      %p237 = scmp.eq.s32.totalorder %s28, 1
      %p238 = por %p236, %p237
      %p240 = scmp.ne.s32.totalorder %s223, %s239
      %p241 = scmp.eq.s32.totalorder %s28, 0
      %p242 = por %p240, %p241
      %p243 = scmp.le.s32.totalorder 1, %s22
      %p244 = scmp.lt.s32.totalorder %s22, 3
      %p245 = pnand %p243, %p244
      %p246 = pneg %p245
      // Predicated region
      $region9: #{tpu_custom_call.1} parent=5 // pred_check
        _
      $region10: #{tpu_custom_call.1} parent=5 // pred_check_branch
        %248 = sbr.rel (%p245) target = $region12
      $region11: #{tpu_custom_call.1} parent=5 // pred_region
        %s249 = ssub.s32 %s22, 1
        // Predicated region
        $region13: #{tpu_custom_call.1} parent=11 // pred_check
          %p250 = pneg %p81
        $region14: #{tpu_custom_call.1} parent=11 // pred_check_branch
          %252 = sbr.rel (%p250) target = $region16
        $region15: #{tpu_custom_call.1} parent=11 // pred_region
          %s254 = ssub.s32 1024, 1024
          %255 = vsyncadd [#allocation10], %s254
          %s256 = sshll.u32 [#allocation9], 4
          %s257 = int_to_ptr.vmem [resolvable:$true] %s256
          %262 = dma.hbm_to_vmem [thread:$0]  %s1, 1024, %s257, [#allocation10], 64, 64, 4
        $region16: #{tpu_custom_call.1} parent=11 // pred_fallthru
          _
        // Predicated region
        $region17: #{tpu_custom_call.1} parent=11 // pred_check
          %p263 = pneg %p102
        $region18: #{tpu_custom_call.1} parent=11 // pred_check_branch
          %265 = sbr.rel (%p263) target = $region20
        $region19: #{tpu_custom_call.1} parent=11 // pred_region
          %s267 = ssub.s32 1024, 1024
          %268 = vsyncadd [#allocation10], %s267
          %s269 = sshll.u32 [#allocation11], 4
          %s270 = int_to_ptr.vmem [resolvable:$true] %s269
          %275 = dma.hbm_to_vmem [thread:$0]  %s2, 1024, %s270, [#allocation10], 64, 64, 4
        $region20: #{tpu_custom_call.1} parent=11 // pred_fallthru
          _
        // Predicated region
        $region21: #{tpu_custom_call.1} parent=11 // pred_check
          %p276 = pneg %p123
        $region22: #{tpu_custom_call.1} parent=11 // pred_check_branch
          %278 = sbr.rel (%p276) target = $region24
        $region23: #{tpu_custom_call.1} parent=11 // pred_region
          %s280 = ssub.s32 1024, 1024
          %281 = vsyncadd [#allocation13], %s280
          %s282 = sshll.u32 [#allocation12], 4
          %s283 = int_to_ptr.vmem [resolvable:$true] %s282
          %288 = dma.hbm_to_vmem [thread:$0]  %s3, 1024, %s283, [#allocation13], 64, 64, 4
        $region24: #{tpu_custom_call.1} parent=11 // pred_fallthru
          _
        // Predicated region
        $region25: #{tpu_custom_call.1} parent=11 // pred_check
          %p289 = pneg %p144
        $region26: #{tpu_custom_call.1} parent=11 // pred_check_branch
          %291 = sbr.rel (%p289) target = $region28
        $region27: #{tpu_custom_call.1} parent=11 // pred_region
          %s293 = ssub.s32 1024, 1024
          %294 = vsyncadd [#allocation13], %s293
          %s295 = sshll.u32 [#allocation14], 4
          %s296 = int_to_ptr.vmem [resolvable:$true] %s295
          %301 = dma.hbm_to_vmem [thread:$0]  %s4, 1024, %s296, [#allocation13], 64, 64, 4
        $region28: #{tpu_custom_call.1} parent=11 // pred_fallthru
          _
        // Predicated region
        $region29: #{tpu_custom_call.1} parent=11 // pred_check
          %p302 = pneg %p165
        $region30: #{tpu_custom_call.1} parent=11 // pred_check_branch
          %304 = sbr.rel (%p302) target = $region32
        $region31: #{tpu_custom_call.1} parent=11 // pred_region
          _
        $region32: #{tpu_custom_call.1} parent=11 // pred_fallthru
          _
        // Predicated region
        $region33: #{tpu_custom_call.1} parent=11 // pred_check
          %p305 = pneg %p186
        $region34: #{tpu_custom_call.1} parent=11 // pred_check_branch
          %307 = sbr.rel (%p305) target = $region36
        $region35: #{tpu_custom_call.1} parent=11 // pred_region
          _
        $region36: #{tpu_custom_call.1} parent=11 // pred_fallthru
          _
        // Predicated region
        $region37: #{tpu_custom_call.1} parent=11 // pred_check
          %p308 = pneg %p207
        $region38: #{tpu_custom_call.1} parent=11 // pred_check_branch
          %310 = sbr.rel (%p308) target = $region40
        $region39: #{tpu_custom_call.1} parent=11 // pred_region
          _
        $region40: #{tpu_custom_call.1} parent=11 // pred_fallthru
          _
      $region12: #{tpu_custom_call.1} parent=5 // pred_fallthru
        _
      %p311 = scmp.lt.s32.totalorder %s22, 2
      // Predicated region
      $region41: #{tpu_custom_call.1} parent=5 // pred_check
        %p312 = pneg %p311
      $region42: #{tpu_custom_call.1} parent=5 // pred_check_branch
        %314 = sbr.rel (%p312) target = $region44
      $region43: #{tpu_custom_call.1} parent=5 // pred_region
        // Predicated region
        $region45: #{tpu_custom_call.1} parent=43 // pred_check
          %p315 = pneg %p54
        $region46: #{tpu_custom_call.1} parent=43 // pred_check_branch
          %317 = sbr.rel (%p315) target = $region48
        $region47: #{tpu_custom_call.1} parent=43 // pred_region
          %s318 = sand.u32 %s44, 1
          %s319 = scalar_lea.sflag [#allocation7], %s318
          %s320 = sand.u32 %s44, 1
          %s321 = smul.addr %s320, 4
          %s322 = scalar_lea.vmem [#allocation6], %s321
          %s324 = ssub.s32 64, 64
          %325 = vsyncadd %s319, %s324
          %s326 = smul.addr %s29, 64
          %s327 = scalar_lea.hbm %s0, %s326
          %s329 = sshll.u32 %s322, 4
          %s330 = int_to_ptr.vmem [resolvable:$true] %s329
          %332 = dma.hbm_to_vmem [thread:$0]  %s327, 64, %s330, %s319
        $region48: #{tpu_custom_call.1} parent=43 // pred_fallthru
          _
      $region44: #{tpu_custom_call.1} parent=5 // pred_fallthru
        _
      %p333 = scmp.le.s32.totalorder 1, %s22
      %p334 = scmp.lt.s32.totalorder %s22, 3
      %p335 = pnand %p333, %p334
      %p336 = pneg %p335
      // Predicated region
      $region49: #{tpu_custom_call.1} parent=5 // pred_check
        _
      $region50: #{tpu_custom_call.1} parent=5 // pred_check_branch
        %338 = sbr.rel (%p335) target = $region52
      $region51: #{tpu_custom_call.1} parent=5 // pred_region
        %s339 = ssub.s32 %s22, 1
        %s340 = sand.u32 %s47, 1
        %s341 = scalar_lea.sflag [#allocation7], %s340
        %s342 = sand.u32 %s47, 1
        %s343 = smul.addr %s342, 4
        %s344 = scalar_lea.vmem [#allocation6], %s343
        // Predicated region
        $region53: #{tpu_custom_call.1} parent=51 // pred_check
          %p345 = pneg %p60
        $region54: #{tpu_custom_call.1} parent=51 // pred_check_branch
          %347 = sbr.rel (%p345) target = $region56
        $region55: #{tpu_custom_call.1} parent=51 // pred_region
          %348 = dma.done %s341, 64
        $region56: #{tpu_custom_call.1} parent=51 // pred_fallthru
          _
        // Predicated region
        $region57: #{tpu_custom_call.1} parent=51 // pred_check
          %p349 = pneg %p81
        $region58: #{tpu_custom_call.1} parent=51 // pred_check_branch
          %351 = sbr.rel (%p349) target = $region60
        $region59: #{tpu_custom_call.1} parent=51 // pred_region
          %352 = dma.done [#allocation10], 1024
        $region60: #{tpu_custom_call.1} parent=51 // pred_fallthru
          _
        // Predicated region
        $region61: #{tpu_custom_call.1} parent=51 // pred_check
          %p353 = pneg %p102
        $region62: #{tpu_custom_call.1} parent=51 // pred_check_branch
          %355 = sbr.rel (%p353) target = $region64
        $region63: #{tpu_custom_call.1} parent=51 // pred_region
          %356 = dma.done [#allocation10], 1024
        $region64: #{tpu_custom_call.1} parent=51 // pred_fallthru
          _
        // Predicated region
        $region65: #{tpu_custom_call.1} parent=51 // pred_check
          %p357 = pneg %p123
        $region66: #{tpu_custom_call.1} parent=51 // pred_check_branch
          %359 = sbr.rel (%p357) target = $region68
        $region67: #{tpu_custom_call.1} parent=51 // pred_region
          %360 = dma.done [#allocation13], 1024
        $region68: #{tpu_custom_call.1} parent=51 // pred_fallthru
          _
        // Predicated region
        $region69: #{tpu_custom_call.1} parent=51 // pred_check
          %p361 = pneg %p144
        $region70: #{tpu_custom_call.1} parent=51 // pred_check_branch
          %363 = sbr.rel (%p361) target = $region72
        $region71: #{tpu_custom_call.1} parent=51 // pred_region
          %364 = dma.done [#allocation13], 1024
        $region72: #{tpu_custom_call.1} parent=51 // pred_fallthru
          _
        %s365 = sand.u32 %s47, 1
        %s366 = scalar_lea.sflag [#allocation7], %s365
        %s367 = sand.u32 %s47, 1
        %s368 = smul.addr %s367, 4
        %s369 = scalar_lea.vmem [#allocation6], %s368
        %p370 = pneg %p60
        %p371 = pneg %p57
        %p372 = pneg %p81
        %p373 = pneg %p78
        %p374 = pneg %p102
        %p375 = pneg %p99
        %p376 = pneg %p123
        %p377 = pneg %p120
        %p378 = pneg %p144
        %p379 = pneg %p141
        %p380 = pneg %p165
        %p381 = pneg %p162
        %p382 = pneg %p186
        %p383 = pneg %p183
        %p384 = pneg %p207
        %p385 = pneg %p204
        %p386 = pneg %p235
        %p387 = pneg %p232
        %s388 = sand.u32 %s222, 1
        %s389 = scalar_lea.sflag [#allocation8], %s388
        %s390 = sand.u32 %s222, 1
        %s391 = smul.addr %s390, 8
        %s392 = scalar_lea.vmem [#allocation15], %s391
        %s394 = smul.u32 %s32, 8
        %s395 = sshra.s32 %s394, 3
        %s396 = sand.u32 %s394, 7
        %s397 = smul.addr %s395, 4
        %s398 = scalar_lea.vmem %s344, %s397 [#allocation6]
        %v399 = vld [vmem:[%s398] sm:$0xf]
        %v400 = vld [vmem:[#allocation9] sm:$0xf]
        %v401 = vld [vmem:[#allocation9 + $0x4] sm:$0xf]
        %v402 = vld [vmem:[#allocation9 + $0x8] sm:$0xf]
        %v403 = vld [vmem:[#allocation9 + $0xc] sm:$0xf]
        %v404 = vld [vmem:[#allocation9 + $0x10] sm:$0xf]
        %v405 = vld [vmem:[#allocation9 + $0x14] sm:$0xf]
        %v406 = vld [vmem:[#allocation9 + $0x18] sm:$0xf]
        %v407 = vld [vmem:[#allocation9 + $0x1c] sm:$0xf]
        %v408 = vld [vmem:[#allocation9 + $0x20] sm:$0xf]
        %v409 = vld [vmem:[#allocation9 + $0x24] sm:$0xf]
        %v410 = vld [vmem:[#allocation9 + $0x28] sm:$0xf]
        %v411 = vld [vmem:[#allocation9 + $0x2c] sm:$0xf]
        %v412 = vld [vmem:[#allocation9 + $0x30] sm:$0xf]
        %v413 = vld [vmem:[#allocation9 + $0x34] sm:$0xf]
        %v414 = vld [vmem:[#allocation9 + $0x38] sm:$0xf]
        %v415 = vld [vmem:[#allocation9 + $0x3c] sm:$0xf]
        %v416 = vld [vmem:[%s5] sm:$0x1]
        %v418 = vlaneseq
        %v419 = vshrl.u32 %v418, 7
        %v420 = vsub.s32 0, %v419
        %v421 = vrot.slane %v416, %v420
        %v439 = vunpack.c.l.b16 %v400
        %v440 = vunpack.c.l.b16 %v401
        %v441 = vunpack.c.l.b16 %v402
        %v442 = vunpack.c.l.b16 %v403
        %v443 = vunpack.c.l.b16 %v404
        %v444 = vunpack.c.l.b16 %v405
        %v445 = vunpack.c.l.b16 %v406
        %v446 = vunpack.c.l.b16 %v407
        %v447 = vunpack.c.l.b16 %v408
        %v448 = vunpack.c.l.b16 %v409
        %v449 = vunpack.c.l.b16 %v410
        %v450 = vunpack.c.l.b16 %v411
        %v451 = vunpack.c.l.b16 %v412
        %v452 = vunpack.c.l.b16 %v413
        %v453 = vunpack.c.l.b16 %v414
        %v454 = vunpack.c.l.b16 %v415
        %v455 = vpack.c.b16 %v440, %v439
        %v456 = vpack.c.b16 %v442, %v441
        %v457 = vpack.c.b16 %v444, %v443
        %v458 = vpack.c.b16 %v446, %v445
        %v459 = vpack.c.b16 %v448, %v447
        %v460 = vpack.c.b16 %v450, %v449
        %v461 = vpack.c.b16 %v452, %v451
        %v462 = vpack.c.b16 %v454, %v453
        %471 = vmatprep.subr.bf16.mxu0 0
        %472 = vmatpush1.bf16.msra.mxu0 %v455
        %473 = vmatprep.subr.bf16.mxu0 0
        %474 = vmatpush1.bf16.msra.mxu0 %v456
        %475 = vmatprep.subr.bf16.mxu0 0
        %476 = vmatpush1.bf16.msra.mxu0 %v457
        %477 = vmatprep.subr.bf16.mxu0 0
        %478 = vmatpush1.bf16.msra.mxu0 %v458
        %479 = vmatprep.subr.bf16.mxu0 0
        %480 = vmatpush1.bf16.msra.mxu0 %v459
        %481 = vmatprep.subr.bf16.mxu0 0
        %482 = vmatpush1.bf16.msra.mxu0 %v460
        %483 = vmatprep.subr.bf16.mxu0 0
        %484 = vmatpush1.bf16.msra.mxu0 %v461
        %485 = vmatprep.subr.bf16.mxu0 0
        %486 = vmatpush1.bf16.msra.mxu0 %v462
        %487 = vmatprep.subr.bf16.mxu0 0
        %488 = vmatpush1.bf16.msra.mxu0 0
        %489 = vmatprep.subr.bf16.mxu0 0
        %490 = vmatpush1.bf16.msra.mxu0 0
        %491 = vmatprep.subr.bf16.mxu0 0
        %492 = vmatpush1.bf16.msra.mxu0 0
        %493 = vmatprep.subr.bf16.mxu0 0
        %494 = vmatpush1.bf16.msra.mxu0 0
        %495 = vmatprep.subr.bf16.mxu0 0
        %496 = vmatpush1.bf16.msra.mxu0 0
        %497 = vmatprep.subr.bf16.mxu0 0
        %498 = vmatpush1.bf16.msra.mxu0 0
        %499 = vmatprep.subr.bf16.mxu0 0
        %500 = vmatpush1.bf16.msra.mxu0 0
        %501 = vmatprep.subr.bf16.mxu0 0
        %502 = vmatpush1.bf16.msra.mxu0 0
        %503 = vmatprep.mubr.bf16.mxu0 0
        %504 = vmatmul.mubr.bf16.gmra.mrb[0].mxu0 %v399
        %v505 = vpop.f32.mrb[0].mxu0
        %v506 = vadd.f32 %v421, %v505
        %v507 = vpop.f32.mrb[0].mxu0
        %v508 = vpop.f32.mrb[0].mxu0
        %v509 = vpop.f32.mrb[0].mxu0
        %510 = vdwg.mxu0
        %v511 = vmul.f32 %v506, 0.35355338
        %v512 = vpack.c.bf16 %v511, %v511
        %513 = vst [vmem:[#allocation2] sm:$0xf] %v512
        %v514 = vld [vmem:[%s344] sm:$0xf]
        %v515 = vld [vmem:[#allocation11] sm:$0xf]
        %v516 = vld [vmem:[#allocation11 + $0x4] sm:$0xf]
        %v517 = vld [vmem:[#allocation11 + $0x8] sm:$0xf]
        %v518 = vld [vmem:[#allocation11 + $0xc] sm:$0xf]
        %v519 = vld [vmem:[#allocation11 + $0x10] sm:$0xf]
        %v520 = vld [vmem:[#allocation11 + $0x14] sm:$0xf]
        %v521 = vld [vmem:[#allocation11 + $0x18] sm:$0xf]
        %v522 = vld [vmem:[#allocation11 + $0x1c] sm:$0xf]
        %v523 = vld [vmem:[#allocation11 + $0x20] sm:$0xf]
        %v524 = vld [vmem:[#allocation11 + $0x24] sm:$0xf]
        %v525 = vld [vmem:[#allocation11 + $0x28] sm:$0xf]
        %v526 = vld [vmem:[#allocation11 + $0x2c] sm:$0xf]
        %v527 = vld [vmem:[#allocation11 + $0x30] sm:$0xf]
        %v528 = vld [vmem:[#allocation11 + $0x34] sm:$0xf]
        %v529 = vld [vmem:[#allocation11 + $0x38] sm:$0xf]
        %v530 = vld [vmem:[#allocation11 + $0x3c] sm:$0xf]
        %v547 = vunpack.c.l.b16 %v515
        %v548 = vunpack.c.l.b16 %v516
        %v549 = vunpack.c.l.b16 %v517
        %v550 = vunpack.c.l.b16 %v518
        %v551 = vunpack.c.l.b16 %v519
        %v552 = vunpack.c.l.b16 %v520
        %v553 = vunpack.c.l.b16 %v521
        %v554 = vunpack.c.l.b16 %v522
        %v555 = vunpack.c.l.b16 %v523
        %v556 = vunpack.c.l.b16 %v524
        %v557 = vunpack.c.l.b16 %v525
        %v558 = vunpack.c.l.b16 %v526
        %v559 = vunpack.c.l.b16 %v527
        %v560 = vunpack.c.l.b16 %v528
        %v561 = vunpack.c.l.b16 %v529
        %v562 = vunpack.c.l.b16 %v530
        %v563 = vpack.c.b16 %v548, %v547
        %v564 = vpack.c.b16 %v550, %v549
        %v565 = vpack.c.b16 %v552, %v551
        %v566 = vpack.c.b16 %v554, %v553
        %v567 = vpack.c.b16 %v556, %v555
        %v568 = vpack.c.b16 %v558, %v557
        %v569 = vpack.c.b16 %v560, %v559
        %v570 = vpack.c.b16 %v562, %v561
        %579 = vmatprep.subr.bf16.mxu0 0
        %580 = vmatpush1.bf16.msra.mxu0 %v563
        %581 = vmatprep.subr.bf16.mxu0 0
        %582 = vmatpush1.bf16.msra.mxu0 %v564
        %583 = vmatprep.subr.bf16.mxu0 0
        %584 = vmatpush1.bf16.msra.mxu0 %v565
        %585 = vmatprep.subr.bf16.mxu0 0
        %586 = vmatpush1.bf16.msra.mxu0 %v566
        %587 = vmatprep.subr.bf16.mxu0 0
        %588 = vmatpush1.bf16.msra.mxu0 %v567
        %589 = vmatprep.subr.bf16.mxu0 0
        %590 = vmatpush1.bf16.msra.mxu0 %v568
        %591 = vmatprep.subr.bf16.mxu0 0
        %592 = vmatpush1.bf16.msra.mxu0 %v569
        %593 = vmatprep.subr.bf16.mxu0 0
        %594 = vmatpush1.bf16.msra.mxu0 %v570
        %595 = vmatprep.subr.bf16.mxu0 0
        %596 = vmatpush1.bf16.msra.mxu0 0
        %597 = vmatprep.subr.bf16.mxu0 0
        %598 = vmatpush1.bf16.msra.mxu0 0
        %599 = vmatprep.subr.bf16.mxu0 0
        %600 = vmatpush1.bf16.msra.mxu0 0
        %601 = vmatprep.subr.bf16.mxu0 0
        %602 = vmatpush1.bf16.msra.mxu0 0
        %603 = vmatprep.subr.bf16.mxu0 0
        %604 = vmatpush1.bf16.msra.mxu0 0
        %605 = vmatprep.subr.bf16.mxu0 0
        %606 = vmatpush1.bf16.msra.mxu0 0
        %607 = vmatprep.subr.bf16.mxu0 0
        %608 = vmatpush1.bf16.msra.mxu0 0
        %609 = vmatprep.subr.bf16.mxu0 0
        %610 = vmatpush1.bf16.msra.mxu0 0
        %611 = vmatprep.mubr.bf16.mxu0 0
        %612 = vmatmul.mubr.bf16.gmra.mrb[0].mxu0 %v514
        %v613 = vpop.f32.mrb[0].mxu0
        %v614 = vadd.f32 0.0, %v613
        %v615 = vpop.f32.mrb[0].mxu0
        %v616 = vpop.f32.mrb[0].mxu0
        %v617 = vpop.f32.mrb[0].mxu0
        %618 = vdwg.mxu0
        %v619 = vpack.c.bf16 %v614, %v614
        %620 = vst [vmem:[#allocation3] sm:$0xf] %v619
        %v621 = vld [vmem:[#allocation12] sm:$0xf]
        %v622 = vld [vmem:[#allocation12 + $0x4] sm:$0xf]
        %v623 = vld [vmem:[#allocation12 + $0x8] sm:$0xf]
        %v624 = vld [vmem:[#allocation12 + $0xc] sm:$0xf]
        %v625 = vld [vmem:[#allocation12 + $0x10] sm:$0xf]
        %v626 = vld [vmem:[#allocation12 + $0x14] sm:$0xf]
        %v627 = vld [vmem:[#allocation12 + $0x18] sm:$0xf]
        %v628 = vld [vmem:[#allocation12 + $0x1c] sm:$0xf]
        %v629 = vld [vmem:[#allocation12 + $0x20] sm:$0xf]
        %v630 = vld [vmem:[#allocation12 + $0x24] sm:$0xf]
        %v631 = vld [vmem:[#allocation12 + $0x28] sm:$0xf]
        %v632 = vld [vmem:[#allocation12 + $0x2c] sm:$0xf]
        %v633 = vld [vmem:[#allocation12 + $0x30] sm:$0xf]
        %v634 = vld [vmem:[#allocation12 + $0x34] sm:$0xf]
        %v635 = vld [vmem:[#allocation12 + $0x38] sm:$0xf]
        %v636 = vld [vmem:[#allocation12 + $0x3c] sm:$0xf]
        %v653 = vunpack.c.l.b16 %v621
        %v654 = vunpack.c.l.b16 %v622
        %v655 = vunpack.c.l.b16 %v623
        %v656 = vunpack.c.l.b16 %v624
        %v657 = vunpack.c.l.b16 %v625
        %v658 = vunpack.c.l.b16 %v626
        %v659 = vunpack.c.l.b16 %v627
        %v660 = vunpack.c.l.b16 %v628
        %v661 = vunpack.c.l.b16 %v629
        %v662 = vunpack.c.l.b16 %v630
        %v663 = vunpack.c.l.b16 %v631
        %v664 = vunpack.c.l.b16 %v632
        %v665 = vunpack.c.l.b16 %v633
        %v666 = vunpack.c.l.b16 %v634
        %v667 = vunpack.c.l.b16 %v635
        %v668 = vunpack.c.l.b16 %v636
        %v669 = vpack.c.b16 %v654, %v653
        %v670 = vpack.c.b16 %v656, %v655
        %v671 = vpack.c.b16 %v658, %v657
        %v672 = vpack.c.b16 %v660, %v659
        %v673 = vpack.c.b16 %v662, %v661
        %v674 = vpack.c.b16 %v664, %v663
        %v675 = vpack.c.b16 %v666, %v665
        %v676 = vpack.c.b16 %v668, %v667
        %685 = vmatprep.subr.bf16.mxu0 0
        %686 = vmatpush1.bf16.msra.mxu0 %v669
        %687 = vmatprep.subr.bf16.mxu0 0
        %688 = vmatpush1.bf16.msra.mxu0 %v670
        %689 = vmatprep.subr.bf16.mxu0 0
        %690 = vmatpush1.bf16.msra.mxu0 %v671
        %691 = vmatprep.subr.bf16.mxu0 0
        %692 = vmatpush1.bf16.msra.mxu0 %v672
        %693 = vmatprep.subr.bf16.mxu0 0
        %694 = vmatpush1.bf16.msra.mxu0 %v673
        %695 = vmatprep.subr.bf16.mxu0 0
        %696 = vmatpush1.bf16.msra.mxu0 %v674
        %697 = vmatprep.subr.bf16.mxu0 0
        %698 = vmatpush1.bf16.msra.mxu0 %v675
        %699 = vmatprep.subr.bf16.mxu0 0
        %700 = vmatpush1.bf16.msra.mxu0 %v676
        %701 = vmatprep.subr.bf16.mxu0 0
        %702 = vmatpush1.bf16.msra.mxu0 0
        %703 = vmatprep.subr.bf16.mxu0 0
        %704 = vmatpush1.bf16.msra.mxu0 0
        %705 = vmatprep.subr.bf16.mxu0 0
        %706 = vmatpush1.bf16.msra.mxu0 0
        %707 = vmatprep.subr.bf16.mxu0 0
        %708 = vmatpush1.bf16.msra.mxu0 0
        %709 = vmatprep.subr.bf16.mxu0 0
        %710 = vmatpush1.bf16.msra.mxu0 0
        %711 = vmatprep.subr.bf16.mxu0 0
        %712 = vmatpush1.bf16.msra.mxu0 0
        %713 = vmatprep.subr.bf16.mxu0 0
        %714 = vmatpush1.bf16.msra.mxu0 0
        %715 = vmatprep.subr.bf16.mxu0 0
        %716 = vmatpush1.bf16.msra.mxu0 0
        %717 = vmatprep.mubr.bf16.mxu0 0
        %718 = vmatmul.mubr.bf16.gmra.mrb[0].mxu0 %v514
        %v719 = vpop.f32.mrb[0].mxu0
        %v720 = vadd.f32 0.0, %v719
        %v721 = vpop.f32.mrb[0].mxu0
        %v722 = vpop.f32.mrb[0].mxu0
        %v723 = vpop.f32.mrb[0].mxu0
        %724 = vdwg.mxu0
        %v725 = vpack.c.bf16 %v720, %v720
        %726 = vst [vmem:[#allocation4] sm:$0xf] %v725
        %v727 = vld [vmem:[#allocation2] sm:$0xf]
        %v728 = vld [vmem:[#allocation3] sm:$0xf]
        %v729 = vld [vmem:[#allocation4] sm:$0xf]
        %vm730 = vcmask 261120
        %v732 = vsel %vm730, %v727, 0
        %v735 = vsel %vm730, %v728, 0
        %737 = vmatprep.subr.bf16.mxu0 0
        %738 = vmatpush1.bf16.xpose.msra.mxu0 %v735
        %739 = vmatprep.subr.bf16.mxu0 0
        %740 = vmatpush1.bf16.xpose.msra.mxu0 0
        %741 = vmatprep.subr.bf16.mxu0 0
        %742 = vmatpush1.bf16.xpose.msra.mxu0 0
        %743 = vmatprep.subr.bf16.mxu0 0
        %744 = vmatpush1.bf16.xpose.msra.mxu0 0
        %745 = vmatprep.subr.bf16.mxu0 0
        %746 = vmatpush1.bf16.xpose.msra.mxu0 0
        %747 = vmatprep.subr.bf16.mxu0 0
        %748 = vmatpush1.bf16.xpose.msra.mxu0 0
        %749 = vmatprep.subr.bf16.mxu0 0
        %750 = vmatpush1.bf16.xpose.msra.mxu0 0
        %751 = vmatprep.subr.bf16.mxu0 0
        %752 = vmatpush1.bf16.xpose.msra.mxu0 0
        %753 = vmatprep.subr.bf16.mxu0 0
        %754 = vmatpush1.bf16.xpose.msra.mxu0 0
        %755 = vmatprep.subr.bf16.mxu0 0
        %756 = vmatpush1.bf16.xpose.msra.mxu0 0
        %757 = vmatprep.subr.bf16.mxu0 0
        %758 = vmatpush1.bf16.xpose.msra.mxu0 0
        %759 = vmatprep.subr.bf16.mxu0 0
        %760 = vmatpush1.bf16.xpose.msra.mxu0 0
        %761 = vmatprep.subr.bf16.mxu0 0
        %762 = vmatpush1.bf16.xpose.msra.mxu0 0
        %763 = vmatprep.subr.bf16.mxu0 0
        %764 = vmatpush1.bf16.xpose.msra.mxu0 0
        %765 = vmatprep.subr.bf16.mxu0 0
        %766 = vmatpush1.bf16.xpose.msra.mxu0 0
        %767 = vmatprep.subr.bf16.mxu0 0
        %768 = vmatpush1.bf16.xpose.msra.mxu0 0
        %769 = vmatprep.mubr.bf16.mxu0 0
        %770 = vmatmul.mubr.bf16.gmra.mrb[0].mxu0 %v732
        %v771 = vpop.f32.mrb[0].mxu0
        %v772 = vadd.f32 0.0, %v771
        %v773 = vpop.f32.mrb[0].mxu0
        %v774 = vpop.f32.mrb[0].mxu0
        %v775 = vpop.f32.mrb[0].mxu0
        %776 = vdwg.mxu0
        %vm777 = vcmask 64512
        %v778 = vsel %vm777, %v772, -inf
        %779 = vmax.xlane.f32.xlu0 %v778
        %v780 = vpop.xlane.xlu0 %779
        %v781 = vmax.f32 %v780, -1e+30
        %v782 = vsub.f32 -1e+30, %v781
        %v783 = vmul.f32 %v782, 1.442695
        %v784 = vpow.pop %v783
        %v785 = vsub.f32 %v772, %v781
        %v786 = vmul.f32 %v785, 1.442695
        %v787 = vpow.pop %v786
        %v788 = vmul.f32 %v784, 0.0
        %v789 = vsel %vm777, %v787, 0.0
        %790 = vadd.xlane.f32.xlu0 %v789
        %v791 = vpop.xlane.xlu0 %790
        %v792 = vadd.f32 %v788, %v791
        %v793 = vpack.c.bf16 %v787, %v787
        %v795 = vsel %vm777, %v793, 0
        %vm797 = vcmask 1043456
        %v799 = vsel %vm797, %v729, 0
        %801 = vmatprep.subr.bf16.mxu0 0
        %802 = vmatpush1.bf16.msra.mxu0 %v799
        %803 = vmatprep.subr.bf16.mxu0 0
        %804 = vmatpush1.bf16.msra.mxu0 0
        %805 = vmatprep.subr.bf16.mxu0 0
        %806 = vmatpush1.bf16.msra.mxu0 0
        %807 = vmatprep.subr.bf16.mxu0 0
        %808 = vmatpush1.bf16.msra.mxu0 0
        %809 = vmatprep.subr.bf16.mxu0 0
        %810 = vmatpush1.bf16.msra.mxu0 0
        %811 = vmatprep.subr.bf16.mxu0 0
        %812 = vmatpush1.bf16.msra.mxu0 0
        %813 = vmatprep.subr.bf16.mxu0 0
        %814 = vmatpush1.bf16.msra.mxu0 0
        %815 = vmatprep.subr.bf16.mxu0 0
        %816 = vmatpush1.bf16.msra.mxu0 0
        %817 = vmatprep.subr.bf16.mxu0 0
        %818 = vmatpush1.bf16.msra.mxu0 0
        %819 = vmatprep.subr.bf16.mxu0 0
        %820 = vmatpush1.bf16.msra.mxu0 0
        %821 = vmatprep.subr.bf16.mxu0 0
        %822 = vmatpush1.bf16.msra.mxu0 0
        %823 = vmatprep.subr.bf16.mxu0 0
        %824 = vmatpush1.bf16.msra.mxu0 0
        %825 = vmatprep.subr.bf16.mxu0 0
        %826 = vmatpush1.bf16.msra.mxu0 0
        %827 = vmatprep.subr.bf16.mxu0 0
        %828 = vmatpush1.bf16.msra.mxu0 0
        %829 = vmatprep.subr.bf16.mxu0 0
        %830 = vmatpush1.bf16.msra.mxu0 0
        %831 = vmatprep.subr.bf16.mxu0 0
        %832 = vmatpush1.bf16.msra.mxu0 0
        %833 = vmatprep.mubr.bf16.mxu0 0
        %834 = vmatmul.mubr.bf16.gmra.mrb[0].mxu0 %v795
        %v835 = vpop.f32.mrb[0].mxu0
        %v836 = vadd.f32 0.0, %v835
        %v837 = vpop.f32.mrb[0].mxu0
        %v838 = vpop.f32.mrb[0].mxu0
        %v839 = vpop.f32.mrb[0].mxu0
        %840 = vdwg.mxu0
        %v841 = vadd.f32 %v788, %v836
        %v842 = vld [vmem:[#allocation2] sm:$0xf]
        %v843 = vld [vmem:[#allocation3] sm:$0xf]
        %v844 = vld [vmem:[#allocation4] sm:$0xf]
        %v846 = vunpack.c.l.b16 %v842
        %v847 = vpack.c.b16 %v846, %v846
        %848 = vrot.lane.b32.xlu0 %v847, 96
        %v849 = vpop.permute.xlu0 %848
        %v851 = vunpack.c.l.b16 %v843
        %v852 = vpack.c.b16 %v851, %v851
        %853 = vrot.lane.b32.xlu0 %v852, 96
        %v854 = vpop.permute.xlu0 %853
        %v856 = vsel %vm730, %v849, 0
        %v859 = vsel %vm730, %v854, 0
        %861 = vmatprep.subr.bf16.mxu0 0
        %862 = vmatpush1.bf16.xpose.msra.mxu0 %v859
        %863 = vmatprep.subr.bf16.mxu0 0
        %864 = vmatpush1.bf16.xpose.msra.mxu0 0
        %865 = vmatprep.subr.bf16.mxu0 0
        %866 = vmatpush1.bf16.xpose.msra.mxu0 0
        %867 = vmatprep.subr.bf16.mxu0 0
        %868 = vmatpush1.bf16.xpose.msra.mxu0 0
        %869 = vmatprep.subr.bf16.mxu0 0
        %870 = vmatpush1.bf16.xpose.msra.mxu0 0
        %871 = vmatprep.subr.bf16.mxu0 0
        %872 = vmatpush1.bf16.xpose.msra.mxu0 0
        %873 = vmatprep.subr.bf16.mxu0 0
        %874 = vmatpush1.bf16.xpose.msra.mxu0 0
        %875 = vmatprep.subr.bf16.mxu0 0
        %876 = vmatpush1.bf16.xpose.msra.mxu0 0
        %877 = vmatprep.subr.bf16.mxu0 0
        %878 = vmatpush1.bf16.xpose.msra.mxu0 0
        %879 = vmatprep.subr.bf16.mxu0 0
        %880 = vmatpush1.bf16.xpose.msra.mxu0 0
        %881 = vmatprep.subr.bf16.mxu0 0
        %882 = vmatpush1.bf16.xpose.msra.mxu0 0
        %883 = vmatprep.subr.bf16.mxu0 0
        %884 = vmatpush1.bf16.xpose.msra.mxu0 0
        %885 = vmatprep.subr.bf16.mxu0 0
        %886 = vmatpush1.bf16.xpose.msra.mxu0 0
        %887 = vmatprep.subr.bf16.mxu0 0
        %888 = vmatpush1.bf16.xpose.msra.mxu0 0
        %889 = vmatprep.subr.bf16.mxu0 0
        %890 = vmatpush1.bf16.xpose.msra.mxu0 0
        %891 = vmatprep.subr.bf16.mxu0 0
        %892 = vmatpush1.bf16.xpose.msra.mxu0 0
        %893 = vmatprep.mubr.bf16.mxu0 0
        %894 = vmatmul.mubr.bf16.gmra.mrb[0].mxu0 %v856
        %v895 = vpop.f32.mrb[0].mxu0
        %v896 = vadd.f32 0.0, %v895
        %v897 = vpop.f32.mrb[0].mxu0
        %v898 = vpop.f32.mrb[0].mxu0
        %v899 = vpop.f32.mrb[0].mxu0
        %900 = vdwg.mxu0
        %v901 = vsel %vm777, %v896, -inf
        %902 = vmax.xlane.f32.xlu0 %v901
        %v903 = vpop.xlane.xlu0 %902
        %v904 = vmax.f32 %v903, -1e+30
        %v905 = vsub.f32 -1e+30, %v904
        %v906 = vmul.f32 %v905, 1.442695
        %v907 = vpow.pop %v906
        %v908 = vsub.f32 %v896, %v904
        %v909 = vmul.f32 %v908, 1.442695
        %v910 = vpow.pop %v909
        %v911 = vmul.f32 %v907, 0.0
        %v912 = vsel %vm777, %v910, 0.0
        %913 = vadd.xlane.f32.xlu0 %v912
        %v914 = vpop.xlane.xlu0 %913
        %v915 = vadd.f32 %v911, %v914
        %v916 = vpack.c.bf16 %v910, %v910
        %v918 = vunpack.c.l.b16 %v844
        %v919 = vpack.c.b16 %v918, %v918
        %920 = vrot.lane.b32.xlu0 %v919, 96
        %v921 = vpop.permute.xlu0 %920
        %v923 = vsel %vm777, %v916, 0
        %v926 = vsel %vm797, %v921, 0
        %928 = vmatprep.subr.bf16.mxu0 0
        %929 = vmatpush1.bf16.msra.mxu0 %v926
        %930 = vmatprep.subr.bf16.mxu0 0
        %931 = vmatpush1.bf16.msra.mxu0 0
        %932 = vmatprep.subr.bf16.mxu0 0
        %933 = vmatpush1.bf16.msra.mxu0 0
        %934 = vmatprep.subr.bf16.mxu0 0
        %935 = vmatpush1.bf16.msra.mxu0 0
        %936 = vmatprep.subr.bf16.mxu0 0
        %937 = vmatpush1.bf16.msra.mxu0 0
        %938 = vmatprep.subr.bf16.mxu0 0
        %939 = vmatpush1.bf16.msra.mxu0 0
        %940 = vmatprep.subr.bf16.mxu0 0
        %941 = vmatpush1.bf16.msra.mxu0 0
        %942 = vmatprep.subr.bf16.mxu0 0
        %943 = vmatpush1.bf16.msra.mxu0 0
        %944 = vmatprep.subr.bf16.mxu0 0
        %945 = vmatpush1.bf16.msra.mxu0 0
        %946 = vmatprep.subr.bf16.mxu0 0
        %947 = vmatpush1.bf16.msra.mxu0 0
        %948 = vmatprep.subr.bf16.mxu0 0
        %949 = vmatpush1.bf16.msra.mxu0 0
        %950 = vmatprep.subr.bf16.mxu0 0
        %951 = vmatpush1.bf16.msra.mxu0 0
        %952 = vmatprep.subr.bf16.mxu0 0
        %953 = vmatpush1.bf16.msra.mxu0 0
        %954 = vmatprep.subr.bf16.mxu0 0
        %955 = vmatpush1.bf16.msra.mxu0 0
        %956 = vmatprep.subr.bf16.mxu0 0
        %957 = vmatpush1.bf16.msra.mxu0 0
        %958 = vmatprep.subr.bf16.mxu0 0
        %959 = vmatpush1.bf16.msra.mxu0 0
        %960 = vmatprep.mubr.bf16.mxu0 0
        %961 = vmatmul.mubr.bf16.gmra.mrb[0].mxu0 %v923
        %v962 = vpop.f32.mrb[0].mxu0
        %v963 = vadd.f32 0.0, %v962
        %v964 = vpop.f32.mrb[0].mxu0
        %v965 = vpop.f32.mrb[0].mxu0
        %v966 = vpop.f32.mrb[0].mxu0
        %967 = vdwg.mxu0
        %v968 = vadd.f32 %v911, %v963
        %v969 = vld [vmem:[#allocation2] sm:$0xf]
        %v970 = vld [vmem:[#allocation3] sm:$0xf]
        %v971 = vld [vmem:[#allocation4] sm:$0xf]
        %v973 = vunpack.c.l.b16 %v969
        %v974 = vpack.c.b16 %v973, %v973
        %975 = vrot.lane.b32.xlu0 %v974, 64
        %v976 = vpop.permute.xlu0 %975
        %v978 = vunpack.c.l.b16 %v970
        %v979 = vpack.c.b16 %v978, %v978
        %980 = vrot.lane.b32.xlu0 %v979, 64
        %v981 = vpop.permute.xlu0 %980
        %v983 = vsel %vm730, %v976, 0
        %v986 = vsel %vm730, %v981, 0
        %988 = vmatprep.subr.bf16.mxu0 0
        %989 = vmatpush1.bf16.xpose.msra.mxu0 %v986
        %990 = vmatprep.subr.bf16.mxu0 0
        %991 = vmatpush1.bf16.xpose.msra.mxu0 0
        %992 = vmatprep.subr.bf16.mxu0 0
        %993 = vmatpush1.bf16.xpose.msra.mxu0 0
        %994 = vmatprep.subr.bf16.mxu0 0
        %995 = vmatpush1.bf16.xpose.msra.mxu0 0
        %996 = vmatprep.subr.bf16.mxu0 0
        %997 = vmatpush1.bf16.xpose.msra.mxu0 0
        %998 = vmatprep.subr.bf16.mxu0 0
        %999 = vmatpush1.bf16.xpose.msra.mxu0 0
        %1000 = vmatprep.subr.bf16.mxu0 0
        %1001 = vmatpush1.bf16.xpose.msra.mxu0 0
        %1002 = vmatprep.subr.bf16.mxu0 0
        %1003 = vmatpush1.bf16.xpose.msra.mxu0 0
        %1004 = vmatprep.subr.bf16.mxu0 0
        %1005 = vmatpush1.bf16.xpose.msra.mxu0 0
        %1006 = vmatprep.subr.bf16.mxu0 0
        %1007 = vmatpush1.bf16.xpose.msra.mxu0 0
        %1008 = vmatprep.subr.bf16.mxu0 0
        %1009 = vmatpush1.bf16.xpose.msra.mxu0 0
        %1010 = vmatprep.subr.bf16.mxu0 0
        %1011 = vmatpush1.bf16.xpose.msra.mxu0 0
        %1012 = vmatprep.subr.bf16.mxu0 0
        %1013 = vmatpush1.bf16.xpose.msra.mxu0 0
        %1014 = vmatprep.subr.bf16.mxu0 0
        %1015 = vmatpush1.bf16.xpose.msra.mxu0 0
        %1016 = vmatprep.subr.bf16.mxu0 0
        %1017 = vmatpush1.bf16.xpose.msra.mxu0 0
        %1018 = vmatprep.subr.bf16.mxu0 0
        %1019 = vmatpush1.bf16.xpose.msra.mxu0 0
        %1020 = vmatprep.mubr.bf16.mxu0 0
        %1021 = vmatmul.mubr.bf16.gmra.mrb[0].mxu0 %v983
        %v1022 = vpop.f32.mrb[0].mxu0
        %v1023 = vadd.f32 0.0, %v1022
        %v1024 = vpop.f32.mrb[0].mxu0
        %v1025 = vpop.f32.mrb[0].mxu0
        %v1026 = vpop.f32.mrb[0].mxu0
        %1027 = vdwg.mxu0
        %v1028 = vsel %vm777, %v1023, -inf
        %1029 = vmax.xlane.f32.xlu0 %v1028
        %v1030 = vpop.xlane.xlu0 %1029
        %v1031 = vmax.f32 %v1030, -1e+30
        %v1032 = vsub.f32 -1e+30, %v1031
        %v1033 = vmul.f32 %v1032, 1.442695
        %v1034 = vpow.pop %v1033
        %v1035 = vsub.f32 %v1023, %v1031
        %v1036 = vmul.f32 %v1035, 1.442695
        %v1037 = vpow.pop %v1036
        %v1038 = vmul.f32 %v1034, 0.0
        %v1039 = vsel %vm777, %v1037, 0.0
        %1040 = vadd.xlane.f32.xlu0 %v1039
        %v1041 = vpop.xlane.xlu0 %1040
        %v1042 = vadd.f32 %v1038, %v1041
        %v1043 = vpack.c.bf16 %v1037, %v1037
        %v1045 = vunpack.c.l.b16 %v971
        %v1046 = vpack.c.b16 %v1045, %v1045
        %1047 = vrot.lane.b32.xlu0 %v1046, 64
        %v1048 = vpop.permute.xlu0 %1047
        %v1050 = vsel %vm777, %v1043, 0
        %v1053 = vsel %vm797, %v1048, 0
        %1055 = vmatprep.subr.bf16.mxu0 0
        %1056 = vmatpush1.bf16.msra.mxu0 %v1053
        %1057 = vmatprep.subr.bf16.mxu0 0
        %1058 = vmatpush1.bf16.msra.mxu0 0
        %1059 = vmatprep.subr.bf16.mxu0 0
        %1060 = vmatpush1.bf16.msra.mxu0 0
        %1061 = vmatprep.subr.bf16.mxu0 0
        %1062 = vmatpush1.bf16.msra.mxu0 0
        %1063 = vmatprep.subr.bf16.mxu0 0
        %1064 = vmatpush1.bf16.msra.mxu0 0
        %1065 = vmatprep.subr.bf16.mxu0 0
        %1066 = vmatpush1.bf16.msra.mxu0 0
        %1067 = vmatprep.subr.bf16.mxu0 0
        %1068 = vmatpush1.bf16.msra.mxu0 0
        %1069 = vmatprep.subr.bf16.mxu0 0
        %1070 = vmatpush1.bf16.msra.mxu0 0
        %1071 = vmatprep.subr.bf16.mxu0 0
        %1072 = vmatpush1.bf16.msra.mxu0 0
        %1073 = vmatprep.subr.bf16.mxu0 0
        %1074 = vmatpush1.bf16.msra.mxu0 0
        %1075 = vmatprep.subr.bf16.mxu0 0
        %1076 = vmatpush1.bf16.msra.mxu0 0
        %1077 = vmatprep.subr.bf16.mxu0 0
        %1078 = vmatpush1.bf16.msra.mxu0 0
        %1079 = vmatprep.subr.bf16.mxu0 0
        %1080 = vmatpush1.bf16.msra.mxu0 0
        %1081 = vmatprep.subr.bf16.mxu0 0
        %1082 = vmatpush1.bf16.msra.mxu0 0
        %1083 = vmatprep.subr.bf16.mxu0 0
        %1084 = vmatpush1.bf16.msra.mxu0 0
        %1085 = vmatprep.subr.bf16.mxu0 0
        %1086 = vmatpush1.bf16.msra.mxu0 0
        %1087 = vmatprep.mubr.bf16.mxu0 0
        %1088 = vmatmul.mubr.bf16.gmra.mrb[0].mxu0 %v1050
        %v1089 = vpop.f32.mrb[0].mxu0
        %v1090 = vadd.f32 0.0, %v1089
        %v1091 = vpop.f32.mrb[0].mxu0
        %v1092 = vpop.f32.mrb[0].mxu0
        %v1093 = vpop.f32.mrb[0].mxu0
        %1094 = vdwg.mxu0
        %v1095 = vadd.f32 %v1038, %v1090
        %v1096 = vld [vmem:[#allocation2] sm:$0xf]
        %v1097 = vld [vmem:[#allocation3] sm:$0xf]
        %v1098 = vld [vmem:[#allocation4] sm:$0xf]
        %v1100 = vunpack.c.l.b16 %v1096
        %v1101 = vpack.c.b16 %v1100, %v1100
        %1102 = vrot.lane.b32.xlu0 %v1101, 32
        %v1103 = vpop.permute.xlu0 %1102
        %v1105 = vunpack.c.l.b16 %v1097
        %v1106 = vpack.c.b16 %v1105, %v1105
        %1107 = vrot.lane.b32.xlu0 %v1106, 32
        %v1108 = vpop.permute.xlu0 %1107
        %v1110 = vsel %vm730, %v1103, 0
        %v1113 = vsel %vm730, %v1108, 0
        %1115 = vmatprep.subr.bf16.mxu0 0
        %1116 = vmatpush1.bf16.xpose.msra.mxu0 %v1113
        %1117 = vmatprep.subr.bf16.mxu0 0
        %1118 = vmatpush1.bf16.xpose.msra.mxu0 0
        %1119 = vmatprep.subr.bf16.mxu0 0
        %1120 = vmatpush1.bf16.xpose.msra.mxu0 0
        %1121 = vmatprep.subr.bf16.mxu0 0
        %1122 = vmatpush1.bf16.xpose.msra.mxu0 0
        %1123 = vmatprep.subr.bf16.mxu0 0
        %1124 = vmatpush1.bf16.xpose.msra.mxu0 0
        %1125 = vmatprep.subr.bf16.mxu0 0
        %1126 = vmatpush1.bf16.xpose.msra.mxu0 0
        %1127 = vmatprep.subr.bf16.mxu0 0
        %1128 = vmatpush1.bf16.xpose.msra.mxu0 0
        %1129 = vmatprep.subr.bf16.mxu0 0
        %1130 = vmatpush1.bf16.xpose.msra.mxu0 0
        %1131 = vmatprep.subr.bf16.mxu0 0
        %1132 = vmatpush1.bf16.xpose.msra.mxu0 0
        %1133 = vmatprep.subr.bf16.mxu0 0
        %1134 = vmatpush1.bf16.xpose.msra.mxu0 0
        %1135 = vmatprep.subr.bf16.mxu0 0
        %1136 = vmatpush1.bf16.xpose.msra.mxu0 0
        %1137 = vmatprep.subr.bf16.mxu0 0
        %1138 = vmatpush1.bf16.xpose.msra.mxu0 0
        %1139 = vmatprep.subr.bf16.mxu0 0
        %1140 = vmatpush1.bf16.xpose.msra.mxu0 0
        %1141 = vmatprep.subr.bf16.mxu0 0
        %1142 = vmatpush1.bf16.xpose.msra.mxu0 0
        %1143 = vmatprep.subr.bf16.mxu0 0
        %1144 = vmatpush1.bf16.xpose.msra.mxu0 0
        %1145 = vmatprep.subr.bf16.mxu0 0
        %1146 = vmatpush1.bf16.xpose.msra.mxu0 0
        %1147 = vmatprep.mubr.bf16.mxu0 0
        %1148 = vmatmul.mubr.bf16.gmra.mrb[0].mxu0 %v1110
        %v1149 = vpop.f32.mrb[0].mxu0
        %v1150 = vadd.f32 0.0, %v1149
        %v1151 = vpop.f32.mrb[0].mxu0
        %v1152 = vpop.f32.mrb[0].mxu0
        %v1153 = vpop.f32.mrb[0].mxu0
        %1154 = vdwg.mxu0
        %v1155 = vsel %vm777, %v1150, -inf
        %1156 = vmax.xlane.f32.xlu0 %v1155
        %v1157 = vpop.xlane.xlu0 %1156
        %v1158 = vmax.f32 %v1157, -1e+30
        %v1159 = vsub.f32 -1e+30, %v1158
        %v1160 = vmul.f32 %v1159, 1.442695
        %v1161 = vpow.pop %v1160
        %v1162 = vsub.f32 %v1150, %v1158
        %v1163 = vmul.f32 %v1162, 1.442695
        %v1164 = vpow.pop %v1163
        %v1165 = vmul.f32 %v1161, 0.0
        %v1166 = vsel %vm777, %v1164, 0.0
        %1167 = vadd.xlane.f32.xlu0 %v1166
        %v1168 = vpop.xlane.xlu0 %1167
        %v1169 = vadd.f32 %v1165, %v1168
        %v1170 = vpack.c.bf16 %v1164, %v1164
        %v1172 = vunpack.c.l.b16 %v1098
        %v1173 = vpack.c.b16 %v1172, %v1172
        %1174 = vrot.lane.b32.xlu0 %v1173, 32
        %v1175 = vpop.permute.xlu0 %1174
        %v1177 = vsel %vm777, %v1170, 0
        %v1180 = vsel %vm797, %v1175, 0
        %1182 = vmatprep.subr.bf16.mxu0 0
        %1183 = vmatpush1.bf16.msra.mxu0 %v1180
        %1184 = vmatprep.subr.bf16.mxu0 0
        %1185 = vmatpush1.bf16.msra.mxu0 0
        %1186 = vmatprep.subr.bf16.mxu0 0
        %1187 = vmatpush1.bf16.msra.mxu0 0
        %1188 = vmatprep.subr.bf16.mxu0 0
        %1189 = vmatpush1.bf16.msra.mxu0 0
        %1190 = vmatprep.subr.bf16.mxu0 0
        %1191 = vmatpush1.bf16.msra.mxu0 0
        %1192 = vmatprep.subr.bf16.mxu0 0
        %1193 = vmatpush1.bf16.msra.mxu0 0
        %1194 = vmatprep.subr.bf16.mxu0 0
        %1195 = vmatpush1.bf16.msra.mxu0 0
        %1196 = vmatprep.subr.bf16.mxu0 0
        %1197 = vmatpush1.bf16.msra.mxu0 0
        %1198 = vmatprep.subr.bf16.mxu0 0
        %1199 = vmatpush1.bf16.msra.mxu0 0
        %1200 = vmatprep.subr.bf16.mxu0 0
        %1201 = vmatpush1.bf16.msra.mxu0 0
        %1202 = vmatprep.subr.bf16.mxu0 0
        %1203 = vmatpush1.bf16.msra.mxu0 0
        %1204 = vmatprep.subr.bf16.mxu0 0
        %1205 = vmatpush1.bf16.msra.mxu0 0
        %1206 = vmatprep.subr.bf16.mxu0 0
        %1207 = vmatpush1.bf16.msra.mxu0 0
        %1208 = vmatprep.subr.bf16.mxu0 0
        %1209 = vmatpush1.bf16.msra.mxu0 0
        %1210 = vmatprep.subr.bf16.mxu0 0
        %1211 = vmatpush1.bf16.msra.mxu0 0
        %1212 = vmatprep.subr.bf16.mxu0 0
        %1213 = vmatpush1.bf16.msra.mxu0 0
        %1214 = vmatprep.mubr.bf16.mxu0 0
        %1215 = vmatmul.mubr.bf16.gmra.mrb[0].mxu0 %v1177
        %v1216 = vpop.f32.mrb[0].mxu0
        %v1217 = vadd.f32 0.0, %v1216
        %v1218 = vpop.f32.mrb[0].mxu0
        %v1219 = vpop.f32.mrb[0].mxu0
        %v1220 = vpop.f32.mrb[0].mxu0
        %1221 = vdwg.mxu0
        %v1222 = vadd.f32 %v1165, %v1217
        %v1223 = vrcp.pop %v792
        %v1224 = vmul.f32 %v841, %v1223
        %v1225 = vld [vmem:[%s6] sm:$0x1]
        %v1227 = vlaneseq
        %v1228 = vshrl.u32 %v1227, 7
        %v1229 = vsub.s32 0, %v1228
        %v1230 = vrot.slane %v1225, %v1229
        %v1232 = vadd.f32 %v1224, %v1230
        %1233 = vst.msk [vmem:[#allocation5] sm:$0xff] %vm730, %v1232
        %v1234 = vrcp.pop %v915
        %v1235 = vmul.f32 %v968, %v1234
        %v1236 = vld [vmem:[%s6] sm:$0x1]
        %v1238 = vlaneseq
        %v1239 = vshrl.u32 %v1238, 7
        %v1240 = vsub.s32 0, %v1239
        %v1241 = vrot.slane %v1236, %v1240
        %1242 = vrot.lane.b32.xlu0 %v1241, 96
        %v1243 = vpop.permute.xlu0 %1242
        %v1245 = vadd.f32 %v1235, %v1243
        %1247 = vrot.lane.b32.xlu0 %v1245, 32
        %v1248 = vpop.permute.xlu0 %1247
        %vm1250 = vcmask 523520
        %1251 = vst.msk [vmem:[#allocation5] sm:$0xff] %vm1250, %v1248
        %v1252 = vrcp.pop %v1042
        %v1253 = vmul.f32 %v1095, %v1252
        %v1254 = vld [vmem:[%s6] sm:$0x1]
        %v1256 = vlaneseq
        %v1257 = vshrl.u32 %v1256, 7
        %v1258 = vsub.s32 0, %v1257
        %v1259 = vrot.slane %v1254, %v1258
        %1260 = vrot.lane.b32.xlu0 %v1259, 64
        %v1261 = vpop.permute.xlu0 %1260
        %v1263 = vadd.f32 %v1253, %v1261
        %1265 = vrot.lane.b32.xlu0 %v1263, 64
        %v1266 = vpop.permute.xlu0 %1265
        %vm1268 = vcmask 785920
        %1269 = vst.msk [vmem:[#allocation5] sm:$0xff] %vm1268, %v1266
        %v1270 = vrcp.pop %v1169
        %v1271 = vmul.f32 %v1222, %v1270
        %v1272 = vld [vmem:[%s6] sm:$0x1]
        %v1274 = vlaneseq
        %v1275 = vshrl.u32 %v1274, 7
        %v1276 = vsub.s32 0, %v1275
        %v1277 = vrot.slane %v1272, %v1276
        %1278 = vrot.lane.b32.xlu0 %v1277, 32
        %v1279 = vpop.permute.xlu0 %1278
        %v1281 = vadd.f32 %v1271, %v1279
        %1283 = vrot.lane.b32.xlu0 %v1281, 96
        %v1284 = vpop.permute.xlu0 %1283
        %vm1286 = vcmask 1048320
        %1287 = vst.msk [vmem:[#allocation5] sm:$0xff] %vm1286, %v1284
        %v1288 = vld [vmem:[#allocation5] sm:$0xff]
        %v1289 = vpack.c.bf16 %v1288, %v1288
        %v1290 = vld [vmem:[#allocation14] sm:$0xf]
        %v1291 = vld [vmem:[#allocation14 + $0x4] sm:$0xf]
        %v1292 = vld [vmem:[#allocation14 + $0x8] sm:$0xf]
        %v1293 = vld [vmem:[#allocation14 + $0xc] sm:$0xf]
        %v1294 = vld [vmem:[#allocation14 + $0x10] sm:$0xf]
        %v1295 = vld [vmem:[#allocation14 + $0x14] sm:$0xf]
        %v1296 = vld [vmem:[#allocation14 + $0x18] sm:$0xf]
        %v1297 = vld [vmem:[#allocation14 + $0x1c] sm:$0xf]
        %v1298 = vld [vmem:[#allocation14 + $0x20] sm:$0xf]
        %v1299 = vld [vmem:[#allocation14 + $0x24] sm:$0xf]
        %v1300 = vld [vmem:[#allocation14 + $0x28] sm:$0xf]
        %v1301 = vld [vmem:[#allocation14 + $0x2c] sm:$0xf]
        %v1302 = vld [vmem:[#allocation14 + $0x30] sm:$0xf]
        %v1303 = vld [vmem:[#allocation14 + $0x34] sm:$0xf]
        %v1304 = vld [vmem:[#allocation14 + $0x38] sm:$0xf]
        %v1305 = vld [vmem:[#allocation14 + $0x3c] sm:$0xf]
        %v1306 = vld [vmem:[%s7] sm:$0x1]
        %v1308 = vlaneseq
        %v1309 = vshrl.u32 %v1308, 7
        %v1310 = vsub.s32 0, %v1309
        %v1311 = vrot.slane %v1306, %v1310
        %v1329 = vunpack.c.l.b16 %v1290
        %v1330 = vunpack.c.l.b16 %v1291
        %v1331 = vunpack.c.l.b16 %v1292
        %v1332 = vunpack.c.l.b16 %v1293
        %v1333 = vunpack.c.l.b16 %v1294
        %v1334 = vunpack.c.l.b16 %v1295
        %v1335 = vunpack.c.l.b16 %v1296
        %v1336 = vunpack.c.l.b16 %v1297
        %v1337 = vunpack.c.l.b16 %v1298
        %v1338 = vunpack.c.l.b16 %v1299
        %v1339 = vunpack.c.l.b16 %v1300
        %v1340 = vunpack.c.l.b16 %v1301
        %v1341 = vunpack.c.l.b16 %v1302
        %v1342 = vunpack.c.l.b16 %v1303
        %v1343 = vunpack.c.l.b16 %v1304
        %v1344 = vunpack.c.l.b16 %v1305
        %v1345 = vpack.c.b16 %v1330, %v1329
        %v1346 = vpack.c.b16 %v1332, %v1331
        %v1347 = vpack.c.b16 %v1334, %v1333
        %v1348 = vpack.c.b16 %v1336, %v1335
        %v1349 = vpack.c.b16 %v1338, %v1337
        %v1350 = vpack.c.b16 %v1340, %v1339
        %v1351 = vpack.c.b16 %v1342, %v1341
        %v1352 = vpack.c.b16 %v1344, %v1343
        %1361 = vmatprep.subr.bf16.mxu0 0
        %1362 = vmatpush1.bf16.msra.mxu0 %v1345
        %1363 = vmatprep.subr.bf16.mxu0 0
        %1364 = vmatpush1.bf16.msra.mxu0 %v1346
        %1365 = vmatprep.subr.bf16.mxu0 0
        %1366 = vmatpush1.bf16.msra.mxu0 %v1347
        %1367 = vmatprep.subr.bf16.mxu0 0
        %1368 = vmatpush1.bf16.msra.mxu0 %v1348
        %1369 = vmatprep.subr.bf16.mxu0 0
        %1370 = vmatpush1.bf16.msra.mxu0 %v1349
        %1371 = vmatprep.subr.bf16.mxu0 0
        %1372 = vmatpush1.bf16.msra.mxu0 %v1350
        %1373 = vmatprep.subr.bf16.mxu0 0
        %1374 = vmatpush1.bf16.msra.mxu0 %v1351
        %1375 = vmatprep.subr.bf16.mxu0 0
        %1376 = vmatpush1.bf16.msra.mxu0 %v1352
        %1377 = vmatprep.subr.bf16.mxu0 0
        %1378 = vmatpush1.bf16.msra.mxu0 0
        %1379 = vmatprep.subr.bf16.mxu0 0
        %1380 = vmatpush1.bf16.msra.mxu0 0
        %1381 = vmatprep.subr.bf16.mxu0 0
        %1382 = vmatpush1.bf16.msra.mxu0 0
        %1383 = vmatprep.subr.bf16.mxu0 0
        %1384 = vmatpush1.bf16.msra.mxu0 0
        %1385 = vmatprep.subr.bf16.mxu0 0
        %1386 = vmatpush1.bf16.msra.mxu0 0
        %1387 = vmatprep.subr.bf16.mxu0 0
        %1388 = vmatpush1.bf16.msra.mxu0 0
        %1389 = vmatprep.subr.bf16.mxu0 0
        %1390 = vmatpush1.bf16.msra.mxu0 0
        %1391 = vmatprep.subr.bf16.mxu0 0
        %1392 = vmatpush1.bf16.msra.mxu0 0
        %1393 = vmatprep.mubr.bf16.mxu0 0
        %1394 = vmatmul.mubr.bf16.gmra.mrb[0].mxu0 %v1289
        %v1395 = vpop.f32.mrb[0].mxu0
        %v1396 = vadd.f32 %v1311, %v1395
        %v1397 = vpop.f32.mrb[0].mxu0
        %v1398 = vpop.f32.mrb[0].mxu0
        %v1399 = vpop.f32.mrb[0].mxu0
        %1400 = vdwg.mxu0
        %1401 = vst [vmem:[%s392] sm:$0xff] %v1396
        %s1402 = sand.u32 %s222, 1
        %s1403 = scalar_lea.sflag [#allocation8], %s1402
        %s1404 = sand.u32 %s222, 1
        %s1405 = smul.addr %s1404, 8
        %s1406 = scalar_lea.vmem [#allocation15], %s1405
        // Predicated region
        $region73: #{tpu_custom_call.1} parent=51 // pred_check
          %p1407 = pneg %p232
        $region74: #{tpu_custom_call.1} parent=51 // pred_check_branch
          %1409 = sbr.rel (%p1407) target = $region76
        $region75: #{tpu_custom_call.1} parent=51 // pred_region
          %s1411 = ssub.s32 128, 128
          %1412 = vsyncadd %s1403, %s1411
          %s1413 = sadd.s32 %s32, %s31
          %s1414 = smul.addr %s1413, 128
          %s1415 = scalar_lea.hbm %s8, %s1414
          %s1417 = sshll.u32 %s1406, 4
          %s1418 = int_to_ptr.vmem [resolvable:$true] %s1417
          %1420 = dma.vmem_to_hbm [thread:$0]  %s1418, 128, %s1415, %s1403
        $region76: #{tpu_custom_call.1} parent=51 // pred_fallthru
          _
      $region52: #{tpu_custom_call.1} parent=5 // pred_fallthru
        _
      %p1421 = scmp.le.s32.totalorder 2, %s22
      // Predicated region
      $region77: #{tpu_custom_call.1} parent=5 // pred_check
        %p1422 = pneg %p1421
      $region78: #{tpu_custom_call.1} parent=5 // pred_check_branch
        %1424 = sbr.rel (%p1422) target = $region80
      $region79: #{tpu_custom_call.1} parent=5 // pred_region
        %s1425 = ssub.s32 %s22, 2
        // Predicated region
        $region81: #{tpu_custom_call.1} parent=79 // pred_check
          %p1426 = pneg %p238
        $region82: #{tpu_custom_call.1} parent=79 // pred_check_branch
          %1428 = sbr.rel (%p1426) target = $region84
        $region83: #{tpu_custom_call.1} parent=79 // pred_region
          %s1429 = sand.u32 %s223, 1
          %s1430 = scalar_lea.sflag [#allocation8], %s1429
          %s1431 = sand.u32 %s223, 1
          %s1432 = smul.addr %s1431, 8
          %s1433 = scalar_lea.vmem [#allocation15], %s1432
          %1434 = dma.done %s1430, 128
        $region84: #{tpu_custom_call.1} parent=79 // pred_fallthru
          _
      $region80: #{tpu_custom_call.1} parent=5 // pred_fallthru
        _
    $region6: #{tpu_custom_call.1} parent=1 // loop_footer
      %s26 = sadd.s32 1, %s22
    $region7: #{tpu_custom_call.1} parent=1 // loop_footer_branch
      %21 = sbr.rel target = $region3
    $region8: #{tpu_custom_call.1} parent=1 // loop_exit
      _
    %1435 = vsyncpa [#allocation7], 1
    %s1436 = scalar_lea.sflag [#allocation7], 1
    %1437 = vsyncpa %s1436, 1
    %1438 = vsyncpa [#allocation10], 1
    %1439 = vsyncpa [#allocation13], 1
    %1440 = vsyncpa [#allocation8], 1
    %s1441 = scalar_lea.sflag [#allocation8], 1
    %1442 = vsyncpa %s1441, 1

</llo_original>
